<compile_context>
chip_gen: v7x
topology: tpu7x:2x2x1
jax: 0.10.0
libtpu: 0.0.40
codegen_flags: <defaults>
</compile_context>

<pallas_src>
import functools

import jax
import jax.numpy as jnp
from jax.experimental import pallas as pl
from jax.experimental.pallas import tpu as pltpu

IN_DIM = 784
LATENT_DIM = 32
HIDDEN_PAD = 128                                   # pad all inner widths to 128 lanes
LAYER_DIMS = [(784, 128), (128, 64), (64, 32),     # encoder
              (32, 64), (64, 128), (128, 784)]     # decoder


def _round_up(n, m):
    return (n + m - 1) // m * m


# ----------------------------------------------------------------------------
# Fused kernel: encoder -> perturb -> decoder, entirely in VMEM.
# ----------------------------------------------------------------------------
def _fused_autoencoder_kernel(idx_ref, noise_ref, x_ref,
                              w0, b0, w1, b1, w2, b2,
                              w3, b3, w4, b4, w5, b5,
                              z_ref, y_ref):
    def dense(h_bf16, w_ref, b_ref, act, out_dtype):
        # bf16 MXU inputs, f32 accumulation, f32 bias/activation epilogue.
        acc = jnp.dot(h_bf16, w_ref[...], preferred_element_type=jnp.float32)
        acc = acc + b_ref[...]
        acc = jnp.maximum(acc, 0.0) if act == "relu" else jnp.tanh(acc)
        return acc.astype(out_dtype)

    # Encoder (x is already bf16; inter-layer activations carried in bf16).
    h = dense(x_ref[...], w0, b0, "relu", jnp.bfloat16)
    h = dense(h, w1, b1, "relu", jnp.bfloat16)
    # Latent layer kept f32 (exact perturbation + z store); padded to 128
    # lanes, cols >= 32 are exactly zero.
    h = dense(h, w2, b2, "relu", jnp.float32)

    # Latent perturbation fused into the latent layer's epilogue:
    #   z[:, idx] = h[:, idx] + noise       (idx normalized in the wrapper)
    # TODO(synk): out-of-range idx (>= 32) silently no-ops here, whereas
    # numpy/PyTorch would raise an IndexError.
    cols = jax.lax.broadcasted_iota(jnp.int32, h.shape, dimension=1)
    z = jnp.where(cols == idx_ref[0], h + noise_ref[0], h)
    z_ref[...] = z[:, :LATENT_DIM]

    # Decoder.
    h = dense(z.astype(jnp.bfloat16), w3, b3, "relu", jnp.bfloat16)
    h = dense(h, w4, b4, "relu", jnp.bfloat16)
    y_ref[...] = dense(h, w5, b5, "tanh", y_ref.dtype)


# ----------------------------------------------------------------------------
# Wrapper: single pallas_call, batch-tiled grid, weights VMEM-resident.
# ----------------------------------------------------------------------------
def _choose_tiling(B, batch_tile):
    b_pad = _round_up(B, 8)
    tile = _round_up(min(batch_tile, b_pad), 8)
    b_pad = _round_up(B, tile)
    # v7x megacore: make sure there are >= 2 grid steps so both TensorCores
    # get work (no-op change on v5e/v6e, which have a single TC).
    if b_pad // tile == 1 and b_pad >= 16:
        tile = _round_up((b_pad + 1) // 2, 8)
        b_pad = _round_up(B, tile)
    return tile, b_pad


@functools.partial(jax.jit, static_argnames=("batch_tile",))
def autoencoder_forward(params, x, idx, noise, *, batch_tile=512):
    """params: six (w:(in,out) f32, b:(out,) f32); x: (B, 784) f32 or bf16."""
    B = x.shape[0]
    tile, b_pad = _choose_tiling(B, batch_tile)
    grid = (b_pad // tile,)

    # Halve the input HBM stream: the MXU consumes bf16 anyway.
    x = x.astype(jnp.bfloat16)
    if b_pad != B:
        x = jnp.pad(x, ((0, b_pad - B), (0, 0)))

    # Lane-dense output store (784 -> 896 = 7*128) only when the batch is
    # large enough that the in-kernel store dominates the de-pad slice.
    pad_out = B >= 512
    y_dim = _round_up(IN_DIM, 128) if pad_out else IN_DIM

    # Normalize negative idx like numpy/PyTorch negative indexing.
    idx_arr = jnp.asarray(idx, dtype=jnp.int32).reshape(1) % LATENT_DIM
    noise_arr = jnp.asarray(noise, dtype=jnp.float32).reshape(1)

    # bf16 weights for the MXU, f32 biases for the epilogue; inner widths
    # zero-padded to 128 lanes (numerically exact).
    dims = [IN_DIM, 128, HIDDEN_PAD, HIDDEN_PAD, HIDDEN_PAD, 128, y_dim]
    flat_params, weight_specs = [], []
    for li, (w, b) in enumerate(params):
        din, dout = dims[li], dims[li + 1]
        wb = jnp.pad(w.astype(jnp.bfloat16),
                     ((0, din - w.shape[0]), (0, dout - w.shape[1])))
        bb = jnp.pad(b.astype(jnp.float32), (0, dout - b.shape[0])).reshape(1, dout)
        flat_params += [wb, bb]
        # Constant block index -> fetched once, stays VMEM-resident across grid.
        weight_specs += [
            pl.BlockSpec(wb.shape, lambda i: (0, 0)),
            pl.BlockSpec(bb.shape, lambda i: (0, 0)),
        ]

    in_specs = [
        pl.BlockSpec(memory_space=pltpu.MemorySpace.SMEM),   # idx   (1,)
        pl.BlockSpec(memory_space=pltpu.MemorySpace.SMEM),   # noise (1,)
        pl.BlockSpec((tile, IN_DIM), lambda i: (i, 0)),      # x batch tile (bf16)
        *weight_specs,
    ]
    out_specs = (
        pl.BlockSpec((tile, LATENT_DIM), lambda i: (i, 0)),  # z
        pl.BlockSpec((tile, y_dim), lambda i: (i, 0)),       # y (possibly padded)
    )

    z, y = pl.pallas_call(
        _fused_autoencoder_kernel,
        out_shape=(
            jax.ShapeDtypeStruct((b_pad, LATENT_DIM), jnp.float32),
            jax.ShapeDtypeStruct((b_pad, y_dim), jnp.float32),
        ),
        grid=grid,
        in_specs=in_specs,
        out_specs=out_specs,
        compiler_params=pltpu.CompilerParams(
            dimension_semantics=("parallel",),
            vmem_limit_bytes=64 * 1024 * 1024,
        ),
    )(idx_arr, noise_arr, x, *flat_params)

    return z[:B], y[:B, :IN_DIM]


# ----------------------------------------------------------------------------
# Parameter construction (deterministic, mimics nn.Linear default init ranges)
# ----------------------------------------------------------------------------
def make_params(key):
    params = []
    for fan_in, fan_out in LAYER_DIMS:
        kw, kb, key = jax.random.split(key, 3)
        bound = 1.0 / jnp.sqrt(fan_in)
        # Stored as (in, out) so the kernel computes x @ W (PyTorch stores (out, in)).
        w = jax.random.uniform(kw, (fan_in, fan_out), jnp.float32, -bound, bound)
        b = jax.random.uniform(kb, (fan_out,), jnp.float32, -bound, bound)
        params.append((w, b))
    return params


# ----------------------------------------------------------------------------
# Reference (pure JAX, same bf16 MXU inputs / f32 accumulation) for checking
# ----------------------------------------------------------------------------
def reference_forward(params, x, idx, noise):
    def dense(h, w, b, act):
        y = jnp.dot(h.astype(jnp.bfloat16), w.astype(jnp.bfloat16),
                    preferred_element_type=jnp.float32) + b
        return jnp.maximum(y, 0.0) if act == "relu" else jnp.tanh(y)

    (w0, b0), (w1, b1), (w2, b2), (w3, b3), (w4, b4), (w5, b5) = params
    h = dense(x, w0, b0, "relu")
    h = dense(h, w1, b1, "relu")
    h = dense(h, w2, b2, "relu")
    z = h.at[:, idx].add(noise)
    y = dense(z, w3, b3, "relu")
    y = dense(y, w4, b4, "relu")
    y = dense(y, w5, b5, "tanh")
    return z, y


if __name__ == "__main__":
    key = jax.random.PRNGKey(0)
    kx, kp = jax.random.split(key)

    B = 8
    x = jax.random.uniform(kx, (B, 784), jnp.float32, -1.0, 1.0)
    idx = 5          # latent column to perturb (0 <= idx < 32)
    noise = 0.25     # scalar noise added to that column

    params = make_params(kp)

    z, y = autoencoder_forward(params, x, idx, noise)
    jax.block_until_ready((z, y))

    z_ref, y_ref = reference_forward(params, x, idx, noise)
    assert z.shape == (B, LATENT_DIM) and y.shape == (B, IN_DIM)
    assert jnp.allclose(z, z_ref, atol=5e-3, rtol=5e-3)
    assert jnp.allclose(y, y_ref, atol=5e-3, rtol=5e-3)

    print("KERNEL_OK")
</pallas_src>

<mosaic_0001>
module attributes {stable_mosaic.version = 11 : i64} {
  func.func @_fused_autoencoder_kernel(%arg0: i32, %arg1: memref<1xi32, #tpu.memory_space<smem>>, %arg2: memref<1xf32, #tpu.memory_space<smem>>, %arg3: memref<8x784xbf16, #tpu.memory_space<vmem>>, %arg4: memref<784x128xbf16, #tpu.memory_space<vmem>>, %arg5: memref<1x128xf32, #tpu.memory_space<vmem>>, %arg6: memref<128x128xbf16, #tpu.memory_space<vmem>>, %arg7: memref<1x128xf32, #tpu.memory_space<vmem>>, %arg8: memref<128x128xbf16, #tpu.memory_space<vmem>>, %arg9: memref<1x128xf32, #tpu.memory_space<vmem>>, %arg10: memref<128x128xbf16, #tpu.memory_space<vmem>>, %arg11: memref<1x128xf32, #tpu.memory_space<vmem>>, %arg12: memref<128x128xbf16, #tpu.memory_space<vmem>>, %arg13: memref<1x128xf32, #tpu.memory_space<vmem>>, %arg14: memref<128x784xbf16, #tpu.memory_space<vmem>>, %arg15: memref<1x784xf32, #tpu.memory_space<vmem>>, %arg16: memref<8x32xf32, #tpu.memory_space<vmem>>, %arg17: memref<8x784xf32, #tpu.memory_space<vmem>>) attributes {dimension_semantics = [#tpu.dimension_semantics<parallel>], iteration_bounds = array<i64: 1>, scalar_prefetch = 0 : i64, scratch_operands = 0 : i64, tpu.core_type = #tpu.core_type<tc>, window_params = [{transform_indices = @transform_0, window_bounds = array<i64: 1>}, {transform_indices = @transform_1, window_bounds = array<i64: 1>}, {transform_indices = @transform_2, window_bounds = array<i64: 8, 784>}, {pipeline_mode = #tpu.pipeline_mode<synchronous>, transform_indices = @transform_3, window_bounds = array<i64: 784, 128>}, {pipeline_mode = #tpu.pipeline_mode<synchronous>, transform_indices = @transform_4, window_bounds = array<i64: 1, 128>}, {pipeline_mode = #tpu.pipeline_mode<synchronous>, transform_indices = @transform_5, window_bounds = array<i64: 128, 128>}, {pipeline_mode = #tpu.pipeline_mode<synchronous>, transform_indices = @transform_6, window_bounds = array<i64: 1, 128>}, {pipeline_mode = #tpu.pipeline_mode<synchronous>, transform_indices = @transform_7, window_bounds = array<i64: 128, 128>}, {pipeline_mode = #tpu.pipeline_mode<synchronous>, transform_indices = @transform_8, window_bounds = array<i64: 1, 128>}, {pipeline_mode = #tpu.pipeline_mode<synchronous>, transform_indices = @transform_9, window_bounds = array<i64: 128, 128>}, {pipeline_mode = #tpu.pipeline_mode<synchronous>, transform_indices = @transform_10, window_bounds = array<i64: 1, 128>}, {pipeline_mode = #tpu.pipeline_mode<synchronous>, transform_indices = @transform_11, window_bounds = array<i64: 128, 128>}, {pipeline_mode = #tpu.pipeline_mode<synchronous>, transform_indices = @transform_12, window_bounds = array<i64: 1, 128>}, {pipeline_mode = #tpu.pipeline_mode<synchronous>, transform_indices = @transform_13, window_bounds = array<i64: 128, 784>}, {pipeline_mode = #tpu.pipeline_mode<synchronous>, transform_indices = @transform_14, window_bounds = array<i64: 1, 784>}, {transform_indices = @transform_15, window_bounds = array<i64: 8, 32>}, {transform_indices = @transform_16, window_bounds = array<i64: 8, 784>}]} {
    %c0 = arith.constant 0 : index
    %c0_0 = arith.constant 0 : index
    %0 = vector.load %arg3[%c0, %c0_0] : memref<8x784xbf16, #tpu.memory_space<vmem>>, vector<8x784xbf16>
    %c0_1 = arith.constant 0 : index
    %c0_2 = arith.constant 0 : index
    %1 = vector.load %arg4[%c0_1, %c0_2] : memref<784x128xbf16, #tpu.memory_space<vmem>>, vector<784x128xbf16>
    %cst = arith.constant dense<0.000000e+00> : vector<8x128xf32>
    %2 = tpu.matmul %0, %1, %cst {dimension_numbers = #tpu.dot_dimension_numbers<[1], [0], [0], [1], [0, 0, 1, 1], [], []>} : vector<8x784xbf16>, vector<784x128xbf16>, vector<8x128xf32> -> vector<8x128xf32>
    %c0_3 = arith.constant 0 : index
    %c0_4 = arith.constant 0 : index
    %3 = vector.load %arg5[%c0_3, %c0_4] : memref<1x128xf32, #tpu.memory_space<vmem>>, vector<1x128xf32>
    %4 = vector.broadcast %3 : vector<1x128xf32> to vector<8x128xf32>
    %5 = arith.addf %2, %4 : vector<8x128xf32>
    %cst_5 = arith.constant 0.000000e+00 : f32
    %6 = vector.broadcast %cst_5 : f32 to vector<8x128xf32>
    %7 = arith.maximumf %5, %6 : vector<8x128xf32>
    %8 = arith.truncf %7 : vector<8x128xf32> to vector<8x128xbf16>
    %c0_6 = arith.constant 0 : index
    %c0_7 = arith.constant 0 : index
    %9 = vector.load %arg6[%c0_6, %c0_7] : memref<128x128xbf16, #tpu.memory_space<vmem>>, vector<128x128xbf16>
    %cst_8 = arith.constant dense<0.000000e+00> : vector<8x128xf32>
    %10 = tpu.matmul %8, %9, %cst_8 {dimension_numbers = #tpu.dot_dimension_numbers<[1], [0], [0], [1], [0, 0, 1, 1], [], []>} : vector<8x128xbf16>, vector<128x128xbf16>, vector<8x128xf32> -> vector<8x128xf32>
    %c0_9 = arith.constant 0 : index
    %c0_10 = arith.constant 0 : index
    %11 = vector.load %arg7[%c0_9, %c0_10] : memref<1x128xf32, #tpu.memory_space<vmem>>, vector<1x128xf32>
    %12 = vector.broadcast %11 : vector<1x128xf32> to vector<8x128xf32>
    %13 = arith.addf %10, %12 : vector<8x128xf32>
    %cst_11 = arith.constant 0.000000e+00 : f32
    %14 = vector.broadcast %cst_11 : f32 to vector<8x128xf32>
    %15 = arith.maximumf %13, %14 : vector<8x128xf32>
    %16 = arith.truncf %15 : vector<8x128xf32> to vector<8x128xbf16>
    %c0_12 = arith.constant 0 : index
    %c0_13 = arith.constant 0 : index
    %17 = vector.load %arg8[%c0_12, %c0_13] : memref<128x128xbf16, #tpu.memory_space<vmem>>, vector<128x128xbf16>
    %cst_14 = arith.constant dense<0.000000e+00> : vector<8x128xf32>
    %18 = tpu.matmul %16, %17, %cst_14 {dimension_numbers = #tpu.dot_dimension_numbers<[1], [0], [0], [1], [0, 0, 1, 1], [], []>} : vector<8x128xbf16>, vector<128x128xbf16>, vector<8x128xf32> -> vector<8x128xf32>
    %c0_15 = arith.constant 0 : index
    %c0_16 = arith.constant 0 : index
    %19 = vector.load %arg9[%c0_15, %c0_16] : memref<1x128xf32, #tpu.memory_space<vmem>>, vector<1x128xf32>
    %20 = vector.broadcast %19 : vector<1x128xf32> to vector<8x128xf32>
    %21 = arith.addf %18, %20 : vector<8x128xf32>
    %cst_17 = arith.constant 0.000000e+00 : f32
    %22 = vector.broadcast %cst_17 : f32 to vector<8x128xf32>
    %23 = arith.maximumf %21, %22 : vector<8x128xf32>
    %24 = tpu.iota {dimensions = array<i32: 1>} : vector<8x128xi32>
    %c0_18 = arith.constant 0 : index
    %25 = memref.load %arg1[%c0_18] : memref<1xi32, #tpu.memory_space<smem>>
    %26 = vector.broadcast %25 : i32 to vector<8x128xi32>
    %27 = arith.cmpi eq, %24, %26 : vector<8x128xi32>
    %c0_19 = arith.constant 0 : index
    %28 = memref.load %arg2[%c0_19] : memref<1xf32, #tpu.memory_space<smem>>
    %29 = vector.broadcast %28 : f32 to vector<8x128xf32>
    %30 = arith.addf %23, %29 : vector<8x128xf32>
    %31 = arith.select %27, %30, %23 : vector<8x128xi1>, vector<8x128xf32>
    %32 = vector.extract_strided_slice %31 {offsets = [0, 0], sizes = [8, 32], strides = [1, 1]} : vector<8x128xf32> to vector<8x32xf32>
    %c0_20 = arith.constant 0 : index
    %c0_21 = arith.constant 0 : index
    %33 = vector.load %arg16[%c0_20, %c0_21] : memref<8x32xf32, #tpu.memory_space<vmem>>, vector<8x32xf32>
    tpu.vector_store %arg16[%c0_20, %c0_21], %32 {strides = array<i32>} : memref<8x32xf32, #tpu.memory_space<vmem>>, vector<8x32xf32>,
    %34 = arith.truncf %31 : vector<8x128xf32> to vector<8x128xbf16>
    %c0_22 = arith.constant 0 : index
    %c0_23 = arith.constant 0 : index
    %35 = vector.load %arg10[%c0_22, %c0_23] : memref<128x128xbf16, #tpu.memory_space<vmem>>, vector<128x128xbf16>
    %cst_24 = arith.constant dense<0.000000e+00> : vector<8x128xf32>
    %36 = tpu.matmul %34, %35, %cst_24 {dimension_numbers = #tpu.dot_dimension_numbers<[1], [0], [0], [1], [0, 0, 1, 1], [], []>} : vector<8x128xbf16>, vector<128x128xbf16>, vector<8x128xf32> -> vector<8x128xf32>
    %c0_25 = arith.constant 0 : index
    %c0_26 = arith.constant 0 : index
    %37 = vector.load %arg11[%c0_25, %c0_26] : memref<1x128xf32, #tpu.memory_space<vmem>>, vector<1x128xf32>
    %38 = vector.broadcast %37 : vector<1x128xf32> to vector<8x128xf32>
    %39 = arith.addf %36, %38 : vector<8x128xf32>
    %cst_27 = arith.constant 0.000000e+00 : f32
    %40 = vector.broadcast %cst_27 : f32 to vector<8x128xf32>
    %41 = arith.maximumf %39, %40 : vector<8x128xf32>
    %42 = arith.truncf %41 : vector<8x128xf32> to vector<8x128xbf16>
    %c0_28 = arith.constant 0 : index
    %c0_29 = arith.constant 0 : index
    %43 = vector.load %arg12[%c0_28, %c0_29] : memref<128x128xbf16, #tpu.memory_space<vmem>>, vector<128x128xbf16>
    %cst_30 = arith.constant dense<0.000000e+00> : vector<8x128xf32>
    %44 = tpu.matmul %42, %43, %cst_30 {dimension_numbers = #tpu.dot_dimension_numbers<[1], [0], [0], [1], [0, 0, 1, 1], [], []>} : vector<8x128xbf16>, vector<128x128xbf16>, vector<8x128xf32> -> vector<8x128xf32>
    %c0_31 = arith.constant 0 : index
    %c0_32 = arith.constant 0 : index
    %45 = vector.load %arg13[%c0_31, %c0_32] : memref<1x128xf32, #tpu.memory_space<vmem>>, vector<1x128xf32>
    %46 = vector.broadcast %45 : vector<1x128xf32> to vector<8x128xf32>
    %47 = arith.addf %44, %46 : vector<8x128xf32>
    %cst_33 = arith.constant 0.000000e+00 : f32
    %48 = vector.broadcast %cst_33 : f32 to vector<8x128xf32>
    %49 = arith.maximumf %47, %48 : vector<8x128xf32>
    %50 = arith.truncf %49 : vector<8x128xf32> to vector<8x128xbf16>
    %c0_34 = arith.constant 0 : index
    %c0_35 = arith.constant 0 : index
    %51 = vector.load %arg14[%c0_34, %c0_35] : memref<128x784xbf16, #tpu.memory_space<vmem>>, vector<128x784xbf16>
    %cst_36 = arith.constant dense<0.000000e+00> : vector<8x784xf32>
    %52 = tpu.matmul %50, %51, %cst_36 {dimension_numbers = #tpu.dot_dimension_numbers<[1], [0], [0], [1], [0, 0, 1, 1], [], []>} : vector<8x128xbf16>, vector<128x784xbf16>, vector<8x784xf32> -> vector<8x784xf32>
    %c0_37 = arith.constant 0 : index
    %c0_38 = arith.constant 0 : index
    %53 = vector.load %arg15[%c0_37, %c0_38] : memref<1x784xf32, #tpu.memory_space<vmem>>, vector<1x784xf32>
    %54 = vector.broadcast %53 : vector<1x784xf32> to vector<8x784xf32>
    %55 = arith.addf %52, %54 : vector<8x784xf32>
    %56 = math.tanh %55 : vector<8x784xf32>
    %c0_39 = arith.constant 0 : index
    %c0_40 = arith.constant 0 : index
    %57 = vector.load %arg17[%c0_39, %c0_40] : memref<8x784xf32, #tpu.memory_space<vmem>>, vector<8x784xf32>
    tpu.vector_store %arg17[%c0_39, %c0_40], %56 {strides = array<i32>} : memref<8x784xf32, #tpu.memory_space<vmem>>, vector<8x784xf32>,
    return
  }
  func.func @transform_0(%arg0: i32) -> i32 {
    %c0_i32 = arith.constant 0 : i32
    %c0_i32_0 = arith.constant 0 : i32
    return %c0_i32 : i32
  }
  func.func @transform_1(%arg0: i32) -> i32 {
    %c0_i32 = arith.constant 0 : i32
    %c0_i32_0 = arith.constant 0 : i32
    return %c0_i32 : i32
  }
  func.func @transform_2(%arg0: i32) -> (i32, i32) {
    %c0_i32 = arith.constant 0 : i32
    %c0_i32_0 = arith.constant 0 : i32
    return %arg0, %c0_i32 : i32, i32
  }
  func.func @transform_3(%arg0: i32) -> (i32, i32) {
    %c0_i32 = arith.constant 0 : i32
    %c0_i32_0 = arith.constant 0 : i32
    %c0_i32_1 = arith.constant 0 : i32
    return %c0_i32, %c0_i32_0 : i32, i32
  }
  func.func @transform_4(%arg0: i32) -> (i32, i32) {
    %c0_i32 = arith.constant 0 : i32
    %c0_i32_0 = arith.constant 0 : i32
    %c0_i32_1 = arith.constant 0 : i32
    return %c0_i32, %c0_i32_0 : i32, i32
  }
  func.func @transform_5(%arg0: i32) -> (i32, i32) {
    %c0_i32 = arith.constant 0 : i32
    %c0_i32_0 = arith.constant 0 : i32
    %c0_i32_1 = arith.constant 0 : i32
    return %c0_i32, %c0_i32_0 : i32, i32
  }
  func.func @transform_6(%arg0: i32) -> (i32, i32) {
    %c0_i32 = arith.constant 0 : i32
    %c0_i32_0 = arith.constant 0 : i32
    %c0_i32_1 = arith.constant 0 : i32
    return %c0_i32, %c0_i32_0 : i32, i32
  }
  func.func @transform_7(%arg0: i32) -> (i32, i32) {
    %c0_i32 = arith.constant 0 : i32
    %c0_i32_0 = arith.constant 0 : i32
    %c0_i32_1 = arith.constant 0 : i32
    return %c0_i32, %c0_i32_0 : i32, i32
  }
  func.func @transform_8(%arg0: i32) -> (i32, i32) {
    %c0_i32 = arith.constant 0 : i32
    %c0_i32_0 = arith.constant 0 : i32
    %c0_i32_1 = arith.constant 0 : i32
    return %c0_i32, %c0_i32_0 : i32, i32
  }
  func.func @transform_9(%arg0: i32) -> (i32, i32) {
    %c0_i32 = arith.constant 0 : i32
    %c0_i32_0 = arith.constant 0 : i32
    %c0_i32_1 = arith.constant 0 : i32
    return %c0_i32, %c0_i32_0 : i32, i32
  }
  func.func @transform_10(%arg0: i32) -> (i32, i32) {
    %c0_i32 = arith.constant 0 : i32
    %c0_i32_0 = arith.constant 0 : i32
    %c0_i32_1 = arith.constant 0 : i32
    return %c0_i32, %c0_i32_0 : i32, i32
  }
  func.func @transform_11(%arg0: i32) -> (i32, i32) {
    %c0_i32 = arith.constant 0 : i32
    %c0_i32_0 = arith.constant 0 : i32
    %c0_i32_1 = arith.constant 0 : i32
    return %c0_i32, %c0_i32_0 : i32, i32
  }
  func.func @transform_12(%arg0: i32) -> (i32, i32) {
    %c0_i32 = arith.constant 0 : i32
    %c0_i32_0 = arith.constant 0 : i32
    %c0_i32_1 = arith.constant 0 : i32
    return %c0_i32, %c0_i32_0 : i32, i32
  }
  func.func @transform_13(%arg0: i32) -> (i32, i32) {
    %c0_i32 = arith.constant 0 : i32
    %c0_i32_0 = arith.constant 0 : i32
    %c0_i32_1 = arith.constant 0 : i32
    return %c0_i32, %c0_i32_0 : i32, i32
  }
  func.func @transform_14(%arg0: i32) -> (i32, i32) {
    %c0_i32 = arith.constant 0 : i32
    %c0_i32_0 = arith.constant 0 : i32
    %c0_i32_1 = arith.constant 0 : i32
    return %c0_i32, %c0_i32_0 : i32, i32
  }
  func.func @transform_15(%arg0: i32) -> (i32, i32) {
    %c0_i32 = arith.constant 0 : i32
    %c0_i32_0 = arith.constant 0 : i32
    return %arg0, %c0_i32 : i32, i32
  }
  func.func @transform_16(%arg0: i32) -> (i32, i32) {
    %c0_i32 = arith.constant 0 : i32
    %c0_i32_0 = arith.constant 0 : i32
    return %arg0, %c0_i32 : i32, i32
  }
}

</mosaic_0001>

<llo_original>
// kernel: autoencoder_forward.1
$region0: #{autoencoder_forward.1}
  #allocation0 [shape = 'u32[]', space=smem, size = 0x4, offset = 0x4, fixed_abs, tag = 'smem constant byte address 0x4 - core index']
  #allocation1 [shape = 'u32[144,128]{1,0:T(1,128)}', space=vmem, size = 0x12000, scoped, tag = 'internal scratch']
  #allocation2 [shape = 's32[1]{0:T(128)S(6)}', space=smem, size = 0x200, scoped, tag = 'scoped memory for autoencoder_forward.1']
  #allocation3 [shape = 'f32[1]{0:T(128)S(6)}', space=smem, size = 0x200, scoped, tag = 'scoped memory for autoencoder_forward.1']
  %s0 = inlined_call_operand.<no memory space> [shape: s32[1], index: 0, kind: input, shape index: {}]
  %s1 = inlined_call_operand.<no memory space> [shape: f32[1], index: 1, kind: input, shape index: {}]
  %s2 = inlined_call_operand.hbm [shape: bf16[8,784], index: 2, kind: input, shape index: {}]
  %s3 = inlined_call_operand.hbm [shape: bf16[784,128], index: 3, kind: input, shape index: {}]
  %s4 = inlined_call_operand.hbm [shape: f32[1,128], index: 4, kind: input, shape index: {}]
  %s5 = inlined_call_operand.hbm [shape: bf16[128,128], index: 5, kind: input, shape index: {}]
  %s6 = inlined_call_operand.hbm [shape: f32[1,128], index: 6, kind: input, shape index: {}]
  %s7 = inlined_call_operand.hbm [shape: bf16[128,128], index: 7, kind: input, shape index: {}]
  %s8 = inlined_call_operand.hbm [shape: f32[1,128], index: 8, kind: input, shape index: {}]
  %s9 = inlined_call_operand.hbm [shape: bf16[128,128], index: 9, kind: input, shape index: {}]
  %s10 = inlined_call_operand.hbm [shape: f32[1,128], index: 10, kind: input, shape index: {}]
  %s11 = inlined_call_operand.hbm [shape: bf16[128,128], index: 11, kind: input, shape index: {}]
  %s12 = inlined_call_operand.hbm [shape: f32[1,128], index: 12, kind: input, shape index: {}]
  %s13 = inlined_call_operand.hbm [shape: bf16[128,784], index: 13, kind: input, shape index: {}]
  %s14 = inlined_call_operand.hbm [shape: f32[1,784], index: 14, kind: input, shape index: {}]
  %s15 = inlined_call_operand.hbm [shape: f32[8,32], index: 15, kind: output, shape index: {0}]
  %s16 = inlined_call_operand.hbm [shape: f32[8,784], index: 16, kind: output, shape index: {1}]
  %17 = xla_tuple %s15, %s16
  %s18 = sld [smem:[#allocation0]]
  $region130: #{autoencoder_forward.1} parent=0
    _
  %s20 = ssub.s32 1, %s18
  %s21 = scalar_select 0, %s20, %s18
  %22 = sst [smem:[#allocation2]] %s0
  %23 = sst [smem:[#allocation3]] %s1
  $region1: #{autoencoder_forward.1} parent=0
    #allocation4 [shape = 'u8[14336]{0}', space=vmem, size = 0x3800, scoped, tag = 'input window, operand 2, single buffered']
    #allocation5 [shape = 's32[1]{0}', space=sflag, size = 0x4, scoped, tag = 'scoped memory for autoencoder_forward.1']
    #allocation6 [shape = 's32[1]{0}', space=sflag, size = 0x4, scoped, tag = 'scoped memory for autoencoder_forward.1']
    #allocation7 [shape = 'u8[200704]{0}', space=vmem, size = 0x31000, scoped, tag = 'input window, operand 3, single buffered']
    #allocation8 [shape = 's32[1]{0}', space=sflag, size = 0x4, scoped, tag = 'scoped memory for autoencoder_forward.1']
    #allocation9 [shape = 'u8[512]{0}', space=vmem, size = 0x400, scoped, tag = 'input window, operand 4, single buffered']
    #allocation10 [shape = 'u8[32768]{0}', space=vmem, size = 0x8000, scoped, tag = 'input window, operand 5, single buffered']
    #allocation11 [shape = 's32[1]{0}', space=sflag, size = 0x4, scoped, tag = 'scoped memory for autoencoder_forward.1']
    #allocation12 [shape = 'u8[512]{0}', space=vmem, size = 0x400, scoped, tag = 'input window, operand 6, single buffered']
    #allocation13 [shape = 'u8[32768]{0}', space=vmem, size = 0x8000, scoped, tag = 'input window, operand 7, single buffered']
    #allocation14 [shape = 's32[1]{0}', space=sflag, size = 0x4, scoped, tag = 'scoped memory for autoencoder_forward.1']
    #allocation15 [shape = 'u8[512]{0}', space=vmem, size = 0x400, scoped, tag = 'input window, operand 8, single buffered']
    #allocation16 [shape = 'u8[32768]{0}', space=vmem, size = 0x8000, scoped, tag = 'input window, operand 9, single buffered']
    #allocation17 [shape = 's32[1]{0}', space=sflag, size = 0x4, scoped, tag = 'scoped memory for autoencoder_forward.1']
    #allocation18 [shape = 'u8[512]{0}', space=vmem, size = 0x400, scoped, tag = 'input window, operand 10, single buffered']
    #allocation19 [shape = 'u8[32768]{0}', space=vmem, size = 0x8000, scoped, tag = 'input window, operand 11, single buffered']
    #allocation20 [shape = 's32[1]{0}', space=sflag, size = 0x4, scoped, tag = 'scoped memory for autoencoder_forward.1']
    #allocation21 [shape = 'u8[512]{0}', space=vmem, size = 0x400, scoped, tag = 'input window, operand 12, single buffered']
    #allocation22 [shape = 'u8[229376]{0}', space=vmem, size = 0x38000, scoped, tag = 'input window, operand 13, single buffered']
    #allocation23 [shape = 's32[1]{0}', space=sflag, size = 0x4, scoped, tag = 'scoped memory for autoencoder_forward.1']
    #allocation24 [shape = 'u8[3584]{0}', space=vmem, size = 0x1000, scoped, tag = 'input window, operand 14, single buffered']
    #allocation25 [shape = 'u8[4096]{0}', space=vmem, size = 0x1000, scoped, tag = 'output window, operand 0, single buffered']
    #allocation26 [shape = 'u8[28672]{0}', space=vmem, size = 0x7000, scoped, tag = 'output window, operand 1, single buffered']
    #allocation27 [shape = 's32[1]{0}', space=sflag, size = 0x4, scoped, tag = 'scoped memory for autoencoder_forward.1']
    %24 = vsyncpa [#allocation5], 0
    %25 = vsyncpa [#allocation8], 0
    %26 = vsyncpa [#allocation11], 0
    %27 = vsyncpa [#allocation14], 0
    %28 = vsyncpa [#allocation17], 0
    %29 = vsyncpa [#allocation20], 0
    %30 = vsyncpa [#allocation23], 0
    %31 = vsyncpa [#allocation6], 0
    %32 = vsyncpa [#allocation27], 0
    // Predicated region
    $region2: #{autoencoder_forward.1} parent=1 // pred_check
      _
    $region3: #{autoencoder_forward.1} parent=1 // pred_check_branch
      %34 = sbr.rel (0) target = $region5
    $region4: #{autoencoder_forward.1} parent=1 // pred_region
      _
    $region5: #{autoencoder_forward.1} parent=1 // pred_fallthru
      _
    // Predicated region
    $region6: #{autoencoder_forward.1} parent=1 // pred_check
      _
    $region7: #{autoencoder_forward.1} parent=1 // pred_check_branch
      %36 = sbr.rel (0) target = $region9
    $region8: #{autoencoder_forward.1} parent=1 // pred_region
      _
    $region9: #{autoencoder_forward.1} parent=1 // pred_fallthru
      _
    // Predicated region
    $region10: #{autoencoder_forward.1} parent=1 // pred_check
      _
    $region11: #{autoencoder_forward.1} parent=1 // pred_check_branch
      %38 = sbr.rel (0) target = $region13
    $region12: #{autoencoder_forward.1} parent=1 // pred_region
      %s40 = ssub.s32 448, 448
      %41 = vsyncadd [#allocation5], %s40
      %s43 = sshll.u32 [#allocation4], 4
      %s44 = int_to_ptr.vmem [resolvable:$true] %s43
      %46 = dma.hbm_to_vmem [thread:$0]  %s2, 448, %s44, [#allocation5]
    $region13: #{autoencoder_forward.1} parent=1 // pred_fallthru
      _
    // Predicated region
    $region14: #{autoencoder_forward.1} parent=1 // pred_check
      _
    $region15: #{autoencoder_forward.1} parent=1 // pred_check_branch
      %48 = sbr.rel (0) target = $region17
    $region16: #{autoencoder_forward.1} parent=1 // pred_region
      %s50 = ssub.s32 6272, 6272
      %51 = vsyncadd [#allocation8], %s50
      %s52 = sshll.u32 [#allocation7], 4
      %s53 = int_to_ptr.vmem [resolvable:$true] %s52
      %58 = dma.hbm_to_vmem [thread:$0]  %s3, 6272, %s53, [#allocation8], 64, 64, 4
    $region17: #{autoencoder_forward.1} parent=1 // pred_fallthru
      _
    // Predicated region
    $region18: #{autoencoder_forward.1} parent=1 // pred_check
      _
    $region19: #{autoencoder_forward.1} parent=1 // pred_check_branch
      %60 = sbr.rel (0) target = $region21
    $region20: #{autoencoder_forward.1} parent=1 // pred_region
      %s62 = ssub.s32 16, 16
      %63 = vsyncadd [#allocation8], %s62
      %s65 = sshll.u32 [#allocation9], 4
      %s66 = int_to_ptr.vmem [resolvable:$true] %s65
      %68 = dma.hbm_to_vmem [thread:$0]  %s4, 16, %s66, [#allocation8]
    $region21: #{autoencoder_forward.1} parent=1 // pred_fallthru
      _
    // Predicated region
    $region22: #{autoencoder_forward.1} parent=1 // pred_check
      _
    $region23: #{autoencoder_forward.1} parent=1 // pred_check_branch
      %70 = sbr.rel (0) target = $region25
    $region24: #{autoencoder_forward.1} parent=1 // pred_region
      %s72 = ssub.s32 1024, 1024
      %73 = vsyncadd [#allocation11], %s72
      %s74 = sshll.u32 [#allocation10], 4
      %s75 = int_to_ptr.vmem [resolvable:$true] %s74
      %80 = dma.hbm_to_vmem [thread:$0]  %s5, 1024, %s75, [#allocation11], 64, 64, 4
    $region25: #{autoencoder_forward.1} parent=1 // pred_fallthru
      _
    // Predicated region
    $region26: #{autoencoder_forward.1} parent=1 // pred_check
      _
    $region27: #{autoencoder_forward.1} parent=1 // pred_check_branch
      %82 = sbr.rel (0) target = $region29
    $region28: #{autoencoder_forward.1} parent=1 // pred_region
      %s84 = ssub.s32 16, 16
      %85 = vsyncadd [#allocation11], %s84
      %s87 = sshll.u32 [#allocation12], 4
      %s88 = int_to_ptr.vmem [resolvable:$true] %s87
      %90 = dma.hbm_to_vmem [thread:$0]  %s6, 16, %s88, [#allocation11]
    $region29: #{autoencoder_forward.1} parent=1 // pred_fallthru
      _
    // Predicated region
    $region30: #{autoencoder_forward.1} parent=1 // pred_check
      _
    $region31: #{autoencoder_forward.1} parent=1 // pred_check_branch
      %92 = sbr.rel (0) target = $region33
    $region32: #{autoencoder_forward.1} parent=1 // pred_region
      %s94 = ssub.s32 1024, 1024
      %95 = vsyncadd [#allocation14], %s94
      %s96 = sshll.u32 [#allocation13], 4
      %s97 = int_to_ptr.vmem [resolvable:$true] %s96
      %102 = dma.hbm_to_vmem [thread:$0]  %s7, 1024, %s97, [#allocation14], 64, 64, 4
    $region33: #{autoencoder_forward.1} parent=1 // pred_fallthru
      _
    // Predicated region
    $region34: #{autoencoder_forward.1} parent=1 // pred_check
      _
    $region35: #{autoencoder_forward.1} parent=1 // pred_check_branch
      %104 = sbr.rel (0) target = $region37
    $region36: #{autoencoder_forward.1} parent=1 // pred_region
      %s106 = ssub.s32 16, 16
      %107 = vsyncadd [#allocation14], %s106
      %s109 = sshll.u32 [#allocation15], 4
      %s110 = int_to_ptr.vmem [resolvable:$true] %s109
      %112 = dma.hbm_to_vmem [thread:$0]  %s8, 16, %s110, [#allocation14]
    $region37: #{autoencoder_forward.1} parent=1 // pred_fallthru
      _
    // Predicated region
    $region38: #{autoencoder_forward.1} parent=1 // pred_check
      _
    $region39: #{autoencoder_forward.1} parent=1 // pred_check_branch
      %114 = sbr.rel (0) target = $region41
    $region40: #{autoencoder_forward.1} parent=1 // pred_region
      %s116 = ssub.s32 1024, 1024
      %117 = vsyncadd [#allocation17], %s116
      %s118 = sshll.u32 [#allocation16], 4
      %s119 = int_to_ptr.vmem [resolvable:$true] %s118
      %124 = dma.hbm_to_vmem [thread:$0]  %s9, 1024, %s119, [#allocation17], 64, 64, 4
    $region41: #{autoencoder_forward.1} parent=1 // pred_fallthru
      _
    // Predicated region
    $region42: #{autoencoder_forward.1} parent=1 // pred_check
      _
    $region43: #{autoencoder_forward.1} parent=1 // pred_check_branch
      %126 = sbr.rel (0) target = $region45
    $region44: #{autoencoder_forward.1} parent=1 // pred_region
      %s128 = ssub.s32 16, 16
      %129 = vsyncadd [#allocation17], %s128
      %s131 = sshll.u32 [#allocation18], 4
      %s132 = int_to_ptr.vmem [resolvable:$true] %s131
      %134 = dma.hbm_to_vmem [thread:$0]  %s10, 16, %s132, [#allocation17]
    $region45: #{autoencoder_forward.1} parent=1 // pred_fallthru
      _
    // Predicated region
    $region46: #{autoencoder_forward.1} parent=1 // pred_check
      _
    $region47: #{autoencoder_forward.1} parent=1 // pred_check_branch
      %136 = sbr.rel (0) target = $region49
    $region48: #{autoencoder_forward.1} parent=1 // pred_region
      %s138 = ssub.s32 1024, 1024
      %139 = vsyncadd [#allocation20], %s138
      %s140 = sshll.u32 [#allocation19], 4
      %s141 = int_to_ptr.vmem [resolvable:$true] %s140
      %146 = dma.hbm_to_vmem [thread:$0]  %s11, 1024, %s141, [#allocation20], 64, 64, 4
    $region49: #{autoencoder_forward.1} parent=1 // pred_fallthru
      _
    // Predicated region
    $region50: #{autoencoder_forward.1} parent=1 // pred_check
      _
    $region51: #{autoencoder_forward.1} parent=1 // pred_check_branch
      %148 = sbr.rel (0) target = $region53
    $region52: #{autoencoder_forward.1} parent=1 // pred_region
      %s150 = ssub.s32 16, 16
      %151 = vsyncadd [#allocation20], %s150
      %s153 = sshll.u32 [#allocation21], 4
      %s154 = int_to_ptr.vmem [resolvable:$true] %s153
      %156 = dma.hbm_to_vmem [thread:$0]  %s12, 16, %s154, [#allocation20]
    $region53: #{autoencoder_forward.1} parent=1 // pred_fallthru
      _
    // Predicated region
    $region54: #{autoencoder_forward.1} parent=1 // pred_check
      _
    $region55: #{autoencoder_forward.1} parent=1 // pred_check_branch
      %158 = sbr.rel (0) target = $region57
    $region56: #{autoencoder_forward.1} parent=1 // pred_region
      %s160 = ssub.s32 7168, 7168
      %161 = vsyncadd [#allocation23], %s160
      %s162 = sshll.u32 [#allocation22], 4
      %s163 = int_to_ptr.vmem [resolvable:$true] %s162
      %168 = dma.hbm_to_vmem [thread:$0]  %s13, 7168, %s163, [#allocation23], 448, 448, 28
    $region57: #{autoencoder_forward.1} parent=1 // pred_fallthru
      _
    // Predicated region
    $region58: #{autoencoder_forward.1} parent=1 // pred_check
      _
    $region59: #{autoencoder_forward.1} parent=1 // pred_check_branch
      %170 = sbr.rel (0) target = $region61
    $region60: #{autoencoder_forward.1} parent=1 // pred_region
      %s172 = ssub.s32 112, 112
      %173 = vsyncadd [#allocation23], %s172
      %s175 = sshll.u32 [#allocation24], 4
      %s176 = int_to_ptr.vmem [resolvable:$true] %s175
      %178 = dma.hbm_to_vmem [thread:$0]  %s14, 112, %s176, [#allocation23]
    $region61: #{autoencoder_forward.1} parent=1 // pred_fallthru
      _
    // Predicated region
    $region62: #{autoencoder_forward.1} parent=1 // pred_check
      _
    $region63: #{autoencoder_forward.1} parent=1 // pred_check_branch
      %180 = sbr.rel (0) target = $region65
    $region64: #{autoencoder_forward.1} parent=1 // pred_region
      %181 = dma.done [#allocation5], 448
    $region65: #{autoencoder_forward.1} parent=1 // pred_fallthru
      _
    // Predicated region
    $region66: #{autoencoder_forward.1} parent=1 // pred_check
      _
    $region67: #{autoencoder_forward.1} parent=1 // pred_check_branch
      %183 = sbr.rel (0) target = $region69
    $region68: #{autoencoder_forward.1} parent=1 // pred_region
      %184 = dma.done [#allocation8], 6272
    $region69: #{autoencoder_forward.1} parent=1 // pred_fallthru
      _
    // Predicated region
    $region70: #{autoencoder_forward.1} parent=1 // pred_check
      _
    $region71: #{autoencoder_forward.1} parent=1 // pred_check_branch
      %186 = sbr.rel (0) target = $region73
    $region72: #{autoencoder_forward.1} parent=1 // pred_region
      %187 = dma.done [#allocation8], 16
    $region73: #{autoencoder_forward.1} parent=1 // pred_fallthru
      _
    // Predicated region
    $region74: #{autoencoder_forward.1} parent=1 // pred_check
      _
    $region75: #{autoencoder_forward.1} parent=1 // pred_check_branch
      %189 = sbr.rel (0) target = $region77
    $region76: #{autoencoder_forward.1} parent=1 // pred_region
      %190 = dma.done [#allocation11], 1024
    $region77: #{autoencoder_forward.1} parent=1 // pred_fallthru
      _
    // Predicated region
    $region78: #{autoencoder_forward.1} parent=1 // pred_check
      _
    $region79: #{autoencoder_forward.1} parent=1 // pred_check_branch
      %192 = sbr.rel (0) target = $region81
    $region80: #{autoencoder_forward.1} parent=1 // pred_region
      %193 = dma.done [#allocation11], 16
    $region81: #{autoencoder_forward.1} parent=1 // pred_fallthru
      _
    // Predicated region
    $region82: #{autoencoder_forward.1} parent=1 // pred_check
      _
    $region83: #{autoencoder_forward.1} parent=1 // pred_check_branch
      %195 = sbr.rel (0) target = $region85
    $region84: #{autoencoder_forward.1} parent=1 // pred_region
      %196 = dma.done [#allocation14], 1024
    $region85: #{autoencoder_forward.1} parent=1 // pred_fallthru
      _
    // Predicated region
    $region86: #{autoencoder_forward.1} parent=1 // pred_check
      _
    $region87: #{autoencoder_forward.1} parent=1 // pred_check_branch
      %198 = sbr.rel (0) target = $region89
    $region88: #{autoencoder_forward.1} parent=1 // pred_region
      %199 = dma.done [#allocation14], 16
    $region89: #{autoencoder_forward.1} parent=1 // pred_fallthru
      _
    // Predicated region
    $region90: #{autoencoder_forward.1} parent=1 // pred_check
      _
    $region91: #{autoencoder_forward.1} parent=1 // pred_check_branch
      %201 = sbr.rel (0) target = $region93
    $region92: #{autoencoder_forward.1} parent=1 // pred_region
      %202 = dma.done [#allocation17], 1024
    $region93: #{autoencoder_forward.1} parent=1 // pred_fallthru
      _
    // Predicated region
    $region94: #{autoencoder_forward.1} parent=1 // pred_check
      _
    $region95: #{autoencoder_forward.1} parent=1 // pred_check_branch
      %204 = sbr.rel (0) target = $region97
    $region96: #{autoencoder_forward.1} parent=1 // pred_region
      %205 = dma.done [#allocation17], 16
    $region97: #{autoencoder_forward.1} parent=1 // pred_fallthru
      _
    // Predicated region
    $region98: #{autoencoder_forward.1} parent=1 // pred_check
      _
    $region99: #{autoencoder_forward.1} parent=1 // pred_check_branch
      %207 = sbr.rel (0) target = $region101
    $region100: #{autoencoder_forward.1} parent=1 // pred_region
      %208 = dma.done [#allocation20], 1024
    $region101: #{autoencoder_forward.1} parent=1 // pred_fallthru
      _
    // Predicated region
    $region102: #{autoencoder_forward.1} parent=1 // pred_check
      _
    $region103: #{autoencoder_forward.1} parent=1 // pred_check_branch
      %210 = sbr.rel (0) target = $region105
    $region104: #{autoencoder_forward.1} parent=1 // pred_region
      %211 = dma.done [#allocation20], 16
    $region105: #{autoencoder_forward.1} parent=1 // pred_fallthru
      _
    // Predicated region
    $region106: #{autoencoder_forward.1} parent=1 // pred_check
      _
    $region107: #{autoencoder_forward.1} parent=1 // pred_check_branch
      %213 = sbr.rel (0) target = $region109
    $region108: #{autoencoder_forward.1} parent=1 // pred_region
      %214 = dma.done [#allocation23], 7168
    $region109: #{autoencoder_forward.1} parent=1 // pred_fallthru
      _
    // Predicated region
    $region110: #{autoencoder_forward.1} parent=1 // pred_check
      _
    $region111: #{autoencoder_forward.1} parent=1 // pred_check_branch
      %216 = sbr.rel (0) target = $region113
    $region112: #{autoencoder_forward.1} parent=1 // pred_region
      %217 = dma.done [#allocation23], 112
    $region113: #{autoencoder_forward.1} parent=1 // pred_fallthru
      _
    %v219 = vld [vmem:[#allocation4] sm:$0xff]
    %v220 = vld [vmem:[#allocation4 + $0x8] sm:$0xff]
    %v221 = vld [vmem:[#allocation4 + $0x10] sm:$0xff]
    %v222 = vld [vmem:[#allocation4 + $0x18] sm:$0xf]
    %v223 = vld [vmem:[#allocation7] sm:$0xf]
    %v224 = vld [vmem:[#allocation7 + $0x4] sm:$0xf]
    %v225 = vld [vmem:[#allocation7 + $0x8] sm:$0xf]
    %v226 = vld [vmem:[#allocation7 + $0xc] sm:$0xf]
    %v227 = vld [vmem:[#allocation7 + $0x10] sm:$0xf]
    %v228 = vld [vmem:[#allocation7 + $0x14] sm:$0xf]
    %v229 = vld [vmem:[#allocation7 + $0x18] sm:$0xf]
    %v230 = vld [vmem:[#allocation7 + $0x1c] sm:$0xf]
    %v231 = vld [vmem:[#allocation7 + $0x20] sm:$0xf]
    %v232 = vld [vmem:[#allocation7 + $0x24] sm:$0xf]
    %v233 = vld [vmem:[#allocation7 + $0x28] sm:$0xf]
    %v234 = vld [vmem:[#allocation7 + $0x2c] sm:$0xf]
    %v235 = vld [vmem:[#allocation7 + $0x30] sm:$0xf]
    %v236 = vld [vmem:[#allocation7 + $0x34] sm:$0xf]
    %v237 = vld [vmem:[#allocation7 + $0x38] sm:$0xf]
    %v238 = vld [vmem:[#allocation7 + $0x3c] sm:$0xf]
    %v239 = vld [vmem:[#allocation7 + $0x40] sm:$0xf]
    %v240 = vld [vmem:[#allocation7 + $0x44] sm:$0xf]
    %v241 = vld [vmem:[#allocation7 + $0x48] sm:$0xf]
    %v242 = vld [vmem:[#allocation7 + $0x4c] sm:$0xf]
    %v243 = vld [vmem:[#allocation7 + $0x50] sm:$0xf]
    %v244 = vld [vmem:[#allocation7 + $0x54] sm:$0xf]
    %v245 = vld [vmem:[#allocation7 + $0x58] sm:$0xf]
    %v246 = vld [vmem:[#allocation7 + $0x5c] sm:$0xf]
    %v247 = vld [vmem:[#allocation7 + $0x60] sm:$0xf]
    %v248 = vld [vmem:[#allocation7 + $0x64] sm:$0xf]
    %v249 = vld [vmem:[#allocation7 + $0x68] sm:$0xf]
    %v250 = vld [vmem:[#allocation7 + $0x6c] sm:$0xf]
    %v251 = vld [vmem:[#allocation7 + $0x70] sm:$0xf]
    %v252 = vld [vmem:[#allocation7 + $0x74] sm:$0xf]
    %v253 = vld [vmem:[#allocation7 + $0x78] sm:$0xf]
    %v254 = vld [vmem:[#allocation7 + $0x7c] sm:$0xf]
    %v255 = vld [vmem:[#allocation7 + $0x80] sm:$0xf]
    %v256 = vld [vmem:[#allocation7 + $0x84] sm:$0xf]
    %v257 = vld [vmem:[#allocation7 + $0x88] sm:$0xf]
    %v258 = vld [vmem:[#allocation7 + $0x8c] sm:$0xf]
    %v259 = vld [vmem:[#allocation7 + $0x90] sm:$0xf]
    %v260 = vld [vmem:[#allocation7 + $0x94] sm:$0xf]
    %v261 = vld [vmem:[#allocation7 + $0x98] sm:$0xf]
    %v262 = vld [vmem:[#allocation7 + $0x9c] sm:$0xf]
    %v263 = vld [vmem:[#allocation7 + $0xa0] sm:$0xf]
    %v264 = vld [vmem:[#allocation7 + $0xa4] sm:$0xf]
    %v265 = vld [vmem:[#allocation7 + $0xa8] sm:$0xf]
    %v266 = vld [vmem:[#allocation7 + $0xac] sm:$0xf]
    %v267 = vld [vmem:[#allocation7 + $0xb0] sm:$0xf]
    %v268 = vld [vmem:[#allocation7 + $0xb4] sm:$0xf]
    %v269 = vld [vmem:[#allocation7 + $0xb8] sm:$0xf]
    %v270 = vld [vmem:[#allocation7 + $0xbc] sm:$0xf]
    %v271 = vld [vmem:[#allocation7 + $0xc0] sm:$0xf]
    %v272 = vld [vmem:[#allocation7 + $0xc4] sm:$0xf]
    %v273 = vld [vmem:[#allocation7 + $0xc8] sm:$0xf]
    %v274 = vld [vmem:[#allocation7 + $0xcc] sm:$0xf]
    %v275 = vld [vmem:[#allocation7 + $0xd0] sm:$0xf]
    %v276 = vld [vmem:[#allocation7 + $0xd4] sm:$0xf]
    %v277 = vld [vmem:[#allocation7 + $0xd8] sm:$0xf]
    %v278 = vld [vmem:[#allocation7 + $0xdc] sm:$0xf]
    %v279 = vld [vmem:[#allocation7 + $0xe0] sm:$0xf]
    %v280 = vld [vmem:[#allocation7 + $0xe4] sm:$0xf]
    %v281 = vld [vmem:[#allocation7 + $0xe8] sm:$0xf]
    %v282 = vld [vmem:[#allocation7 + $0xec] sm:$0xf]
    %v283 = vld [vmem:[#allocation7 + $0xf0] sm:$0xf]
    %v284 = vld [vmem:[#allocation7 + $0xf4] sm:$0xf]
    %v285 = vld [vmem:[#allocation7 + $0xf8] sm:$0xf]
    %v286 = vld [vmem:[#allocation7 + $0xfc] sm:$0xf]
    %v287 = vld [vmem:[#allocation7 + $0x100] sm:$0xf]
    %v288 = vld [vmem:[#allocation7 + $0x104] sm:$0xf]
    %v289 = vld [vmem:[#allocation7 + $0x108] sm:$0xf]
    %v290 = vld [vmem:[#allocation7 + $0x10c] sm:$0xf]
    %v291 = vld [vmem:[#allocation7 + $0x110] sm:$0xf]
    %v292 = vld [vmem:[#allocation7 + $0x114] sm:$0xf]
    %v293 = vld [vmem:[#allocation7 + $0x118] sm:$0xf]
    %v294 = vld [vmem:[#allocation7 + $0x11c] sm:$0xf]
    %v295 = vld [vmem:[#allocation7 + $0x120] sm:$0xf]
    %v296 = vld [vmem:[#allocation7 + $0x124] sm:$0xf]
    %v297 = vld [vmem:[#allocation7 + $0x128] sm:$0xf]
    %v298 = vld [vmem:[#allocation7 + $0x12c] sm:$0xf]
    %v299 = vld [vmem:[#allocation7 + $0x130] sm:$0xf]
    %v300 = vld [vmem:[#allocation7 + $0x134] sm:$0xf]
    %v301 = vld [vmem:[#allocation7 + $0x138] sm:$0xf]
    %v302 = vld [vmem:[#allocation7 + $0x13c] sm:$0xf]
    %v303 = vld [vmem:[#allocation7 + $0x140] sm:$0xf]
    %v304 = vld [vmem:[#allocation7 + $0x144] sm:$0xf]
    %v305 = vld [vmem:[#allocation7 + $0x148] sm:$0xf]
    %v306 = vld [vmem:[#allocation7 + $0x14c] sm:$0xf]
    %v307 = vld [vmem:[#allocation7 + $0x150] sm:$0xf]
    %v308 = vld [vmem:[#allocation7 + $0x154] sm:$0xf]
    %v309 = vld [vmem:[#allocation7 + $0x158] sm:$0xf]
    %v310 = vld [vmem:[#allocation7 + $0x15c] sm:$0xf]
    %v311 = vld [vmem:[#allocation7 + $0x160] sm:$0xf]
    %v312 = vld [vmem:[#allocation7 + $0x164] sm:$0xf]
    %v313 = vld [vmem:[#allocation7 + $0x168] sm:$0xf]
    %v314 = vld [vmem:[#allocation7 + $0x16c] sm:$0xf]
    %v315 = vld [vmem:[#allocation7 + $0x170] sm:$0xf]
    %v316 = vld [vmem:[#allocation7 + $0x174] sm:$0xf]
    %v317 = vld [vmem:[#allocation7 + $0x178] sm:$0xf]
    %v318 = vld [vmem:[#allocation7 + $0x17c] sm:$0xf]
    %v319 = vld [vmem:[#allocation7 + $0x180] sm:$0xf]
    %v320 = vld [vmem:[#allocation7 + $0x184] sm:$0xf]
    %v321 = vld [vmem:[#allocation9] sm:$0x1]
    %v323 = vlaneseq
    %v324 = vshrl.u32 %v323, 7
    %v325 = vsub.s32 0, %v324
    %v326 = vrot.slane %v321, %v325
    %v332 = vunpack.c.l.b16 %v219
    %v333 = vunpack.c.h.b16 %v219
    %v334 = vunpack.c.l.b16 %v220
    %v335 = vunpack.c.h.b16 %v220
    %v336 = vunpack.c.l.b16 %v221
    %v337 = vunpack.c.h.b16 %v221
    %v338 = vunpack.c.l.b16 %v222
    %v339 = vpack.c.b16 %v332, %v332
    %v340 = vpack.c.b16 %v333, %v333
    %v341 = vpack.c.b16 %v334, %v334
    %v342 = vpack.c.b16 %v335, %v335
    %v343 = vpack.c.b16 %v336, %v336
    %v344 = vpack.c.b16 %v337, %v337
    %v345 = vpack.c.b16 %v338, %v338
    %v450 = vunpack.c.l.b16 %v223
    %v451 = vunpack.c.l.b16 %v224
    %v452 = vunpack.c.l.b16 %v225
    %v453 = vunpack.c.l.b16 %v226
    %v454 = vunpack.c.l.b16 %v227
    %v455 = vunpack.c.l.b16 %v228
    %v456 = vunpack.c.l.b16 %v229
    %v457 = vunpack.c.l.b16 %v230
    %v458 = vunpack.c.l.b16 %v231
    %v459 = vunpack.c.l.b16 %v232
    %v460 = vunpack.c.l.b16 %v233
    %v461 = vunpack.c.l.b16 %v234
    %v462 = vunpack.c.l.b16 %v235
    %v463 = vunpack.c.l.b16 %v236
    %v464 = vunpack.c.l.b16 %v237
    %v465 = vunpack.c.l.b16 %v238
    %v466 = vunpack.c.l.b16 %v239
    %v467 = vunpack.c.l.b16 %v240
    %v468 = vunpack.c.l.b16 %v241
    %v469 = vunpack.c.l.b16 %v242
    %v470 = vunpack.c.l.b16 %v243
    %v471 = vunpack.c.l.b16 %v244
    %v472 = vunpack.c.l.b16 %v245
    %v473 = vunpack.c.l.b16 %v246
    %v474 = vunpack.c.l.b16 %v247
    %v475 = vunpack.c.l.b16 %v248
    %v476 = vunpack.c.l.b16 %v249
    %v477 = vunpack.c.l.b16 %v250
    %v478 = vunpack.c.l.b16 %v251
    %v479 = vunpack.c.l.b16 %v252
    %v480 = vunpack.c.l.b16 %v253
    %v481 = vunpack.c.l.b16 %v254
    %v482 = vunpack.c.l.b16 %v255
    %v483 = vunpack.c.l.b16 %v256
    %v484 = vunpack.c.l.b16 %v257
    %v485 = vunpack.c.l.b16 %v258
    %v486 = vunpack.c.l.b16 %v259
    %v487 = vunpack.c.l.b16 %v260
    %v488 = vunpack.c.l.b16 %v261
    %v489 = vunpack.c.l.b16 %v262
    %v490 = vunpack.c.l.b16 %v263
    %v491 = vunpack.c.l.b16 %v264
    %v492 = vunpack.c.l.b16 %v265
    %v493 = vunpack.c.l.b16 %v266
    %v494 = vunpack.c.l.b16 %v267
    %v495 = vunpack.c.l.b16 %v268
    %v496 = vunpack.c.l.b16 %v269
    %v497 = vunpack.c.l.b16 %v270
    %v498 = vunpack.c.l.b16 %v271
    %v499 = vunpack.c.l.b16 %v272
    %v500 = vunpack.c.l.b16 %v273
    %v501 = vunpack.c.l.b16 %v274
    %v502 = vunpack.c.l.b16 %v275
    %v503 = vunpack.c.l.b16 %v276
    %v504 = vunpack.c.l.b16 %v277
    %v505 = vunpack.c.l.b16 %v278
    %v506 = vunpack.c.l.b16 %v279
    %v507 = vunpack.c.l.b16 %v280
    %v508 = vunpack.c.l.b16 %v281
    %v509 = vunpack.c.l.b16 %v282
    %v510 = vunpack.c.l.b16 %v283
    %v511 = vunpack.c.l.b16 %v284
    %v512 = vunpack.c.l.b16 %v285
    %v513 = vunpack.c.l.b16 %v286
    %v514 = vunpack.c.l.b16 %v287
    %v515 = vunpack.c.l.b16 %v288
    %v516 = vunpack.c.l.b16 %v289
    %v517 = vunpack.c.l.b16 %v290
    %v518 = vunpack.c.l.b16 %v291
    %v519 = vunpack.c.l.b16 %v292
    %v520 = vunpack.c.l.b16 %v293
    %v521 = vunpack.c.l.b16 %v294
    %v522 = vunpack.c.l.b16 %v295
    %v523 = vunpack.c.l.b16 %v296
    %v524 = vunpack.c.l.b16 %v297
    %v525 = vunpack.c.l.b16 %v298
    %v526 = vunpack.c.l.b16 %v299
    %v527 = vunpack.c.l.b16 %v300
    %v528 = vunpack.c.l.b16 %v301
    %v529 = vunpack.c.l.b16 %v302
    %v530 = vunpack.c.l.b16 %v303
    %v531 = vunpack.c.l.b16 %v304
    %v532 = vunpack.c.l.b16 %v305
    %v533 = vunpack.c.l.b16 %v306
    %v534 = vunpack.c.l.b16 %v307
    %v535 = vunpack.c.l.b16 %v308
    %v536 = vunpack.c.l.b16 %v309
    %v537 = vunpack.c.l.b16 %v310
    %v538 = vunpack.c.l.b16 %v311
    %v539 = vunpack.c.l.b16 %v312
    %v540 = vunpack.c.l.b16 %v313
    %v541 = vunpack.c.l.b16 %v314
    %v542 = vunpack.c.l.b16 %v315
    %v543 = vunpack.c.l.b16 %v316
    %v544 = vunpack.c.l.b16 %v317
    %v545 = vunpack.c.l.b16 %v318
    %v546 = vunpack.c.l.b16 %v319
    %v547 = vunpack.c.l.b16 %v320
    %v548 = vpack.c.b16 %v451, %v450
    %v549 = vpack.c.b16 %v453, %v452
    %v550 = vpack.c.b16 %v455, %v454
    %v551 = vpack.c.b16 %v457, %v456
    %v552 = vpack.c.b16 %v459, %v458
    %v553 = vpack.c.b16 %v461, %v460
    %v554 = vpack.c.b16 %v463, %v462
    %v555 = vpack.c.b16 %v465, %v464
    %v556 = vpack.c.b16 %v467, %v466
    %v557 = vpack.c.b16 %v469, %v468
    %v558 = vpack.c.b16 %v471, %v470
    %v559 = vpack.c.b16 %v473, %v472
    %v560 = vpack.c.b16 %v475, %v474
    %v561 = vpack.c.b16 %v477, %v476
    %v562 = vpack.c.b16 %v479, %v478
    %v563 = vpack.c.b16 %v481, %v480
    %v564 = vpack.c.b16 %v483, %v482
    %v565 = vpack.c.b16 %v485, %v484
    %v566 = vpack.c.b16 %v487, %v486
    %v567 = vpack.c.b16 %v489, %v488
    %v568 = vpack.c.b16 %v491, %v490
    %v569 = vpack.c.b16 %v493, %v492
    %v570 = vpack.c.b16 %v495, %v494
    %v571 = vpack.c.b16 %v497, %v496
    %v572 = vpack.c.b16 %v499, %v498
    %v573 = vpack.c.b16 %v501, %v500
    %v574 = vpack.c.b16 %v503, %v502
    %v575 = vpack.c.b16 %v505, %v504
    %v576 = vpack.c.b16 %v507, %v506
    %v577 = vpack.c.b16 %v509, %v508
    %v578 = vpack.c.b16 %v511, %v510
    %v579 = vpack.c.b16 %v513, %v512
    %v580 = vpack.c.b16 %v515, %v514
    %v581 = vpack.c.b16 %v517, %v516
    %v582 = vpack.c.b16 %v519, %v518
    %v583 = vpack.c.b16 %v521, %v520
    %v584 = vpack.c.b16 %v523, %v522
    %v585 = vpack.c.b16 %v525, %v524
    %v586 = vpack.c.b16 %v527, %v526
    %v587 = vpack.c.b16 %v529, %v528
    %v588 = vpack.c.b16 %v531, %v530
    %v589 = vpack.c.b16 %v533, %v532
    %v590 = vpack.c.b16 %v535, %v534
    %v591 = vpack.c.b16 %v537, %v536
    %v592 = vpack.c.b16 %v539, %v538
    %v593 = vpack.c.b16 %v541, %v540
    %v594 = vpack.c.b16 %v543, %v542
    %v595 = vpack.c.b16 %v545, %v544
    %v596 = vpack.c.b16 %v547, %v546
    %vm646 = vcmask 130048
    %v648 = vsel %vm646, %v345, 0
    %650 = vmatprep.subr.bf16.mxu0 0
    %651 = vmatpush1.bf16.msra.mxu0 %v548
    %652 = vmatprep.subr.bf16.mxu0 0
    %653 = vmatpush1.bf16.msra.mxu0 %v549
    %654 = vmatprep.subr.bf16.mxu0 0
    %655 = vmatpush1.bf16.msra.mxu0 %v550
    %656 = vmatprep.subr.bf16.mxu0 0
    %657 = vmatpush1.bf16.msra.mxu0 %v551
    %658 = vmatprep.subr.bf16.mxu0 0
    %659 = vmatpush1.bf16.msra.mxu0 %v552
    %660 = vmatprep.subr.bf16.mxu0 0
    %661 = vmatpush1.bf16.msra.mxu0 %v553
    %662 = vmatprep.subr.bf16.mxu0 0
    %663 = vmatpush1.bf16.msra.mxu0 %v554
    %664 = vmatprep.subr.bf16.mxu0 0
    %665 = vmatpush1.bf16.msra.mxu0 %v555
    %666 = vmatprep.subr.bf16.mxu0 0
    %667 = vmatpush1.bf16.msra.mxu0 %v556
    %668 = vmatprep.subr.bf16.mxu0 0
    %669 = vmatpush1.bf16.msra.mxu0 %v557
    %670 = vmatprep.subr.bf16.mxu0 0
    %671 = vmatpush1.bf16.msra.mxu0 %v558
    %672 = vmatprep.subr.bf16.mxu0 0
    %673 = vmatpush1.bf16.msra.mxu0 %v559
    %674 = vmatprep.subr.bf16.mxu0 0
    %675 = vmatpush1.bf16.msra.mxu0 %v560
    %676 = vmatprep.subr.bf16.mxu0 0
    %677 = vmatpush1.bf16.msra.mxu0 %v561
    %678 = vmatprep.subr.bf16.mxu0 0
    %679 = vmatpush1.bf16.msra.mxu0 %v562
    %680 = vmatprep.subr.bf16.mxu0 0
    %681 = vmatpush1.bf16.msra.mxu0 %v563
    %682 = vmatprep.mubr.bf16.mxu0 %v340
    %683 = vmatmul.mubr.bf16.gmra.mrb[0].mxu0 %v339
    %v684 = vpop.f32.mrb[0].mxu0
    %v685 = vadd.f32 %v326, %v684
    %v686 = vpop.f32.mrb[0].mxu0
    %v687 = vpop.f32.mrb[0].mxu0
    %v688 = vpop.f32.mrb[0].mxu0
    %689 = vdwg.mxu0
    %690 = vmatprep.subr.bf16.mxu0 0
    %691 = vmatpush1.bf16.msra.mxu0 %v564
    %692 = vmatprep.subr.bf16.mxu0 0
    %693 = vmatpush1.bf16.msra.mxu0 %v565
    %694 = vmatprep.subr.bf16.mxu0 0
    %695 = vmatpush1.bf16.msra.mxu0 %v566
    %696 = vmatprep.subr.bf16.mxu0 0
    %697 = vmatpush1.bf16.msra.mxu0 %v567
    %698 = vmatprep.subr.bf16.mxu0 0
    %699 = vmatpush1.bf16.msra.mxu0 %v568
    %700 = vmatprep.subr.bf16.mxu0 0
    %701 = vmatpush1.bf16.msra.mxu0 %v569
    %702 = vmatprep.subr.bf16.mxu0 0
    %703 = vmatpush1.bf16.msra.mxu0 %v570
    %704 = vmatprep.subr.bf16.mxu0 0
    %705 = vmatpush1.bf16.msra.mxu0 %v571
    %706 = vmatprep.subr.bf16.mxu0 0
    %707 = vmatpush1.bf16.msra.mxu0 %v572
    %708 = vmatprep.subr.bf16.mxu0 0
    %709 = vmatpush1.bf16.msra.mxu0 %v573
    %710 = vmatprep.subr.bf16.mxu0 0
    %711 = vmatpush1.bf16.msra.mxu0 %v574
    %712 = vmatprep.subr.bf16.mxu0 0
    %713 = vmatpush1.bf16.msra.mxu0 %v575
    %714 = vmatprep.subr.bf16.mxu0 0
    %715 = vmatpush1.bf16.msra.mxu0 %v576
    %716 = vmatprep.subr.bf16.mxu0 0
    %717 = vmatpush1.bf16.msra.mxu0 %v577
    %718 = vmatprep.subr.bf16.mxu0 0
    %719 = vmatpush1.bf16.msra.mxu0 %v578
    %720 = vmatprep.subr.bf16.mxu0 0
    %721 = vmatpush1.bf16.msra.mxu0 %v579
    %722 = vmatprep.mubr.bf16.mxu0 %v342
    %723 = vmatmul.mubr.bf16.gmra.mrb[0].mxu0 %v341
    %v724 = vpop.f32.mrb[0].mxu0
    %v725 = vadd.f32 %v685, %v724
    %v726 = vpop.f32.mrb[0].mxu0
    %v727 = vpop.f32.mrb[0].mxu0
    %v728 = vpop.f32.mrb[0].mxu0
    %729 = vdwg.mxu0
    %730 = vmatprep.subr.bf16.mxu0 0
    %731 = vmatpush1.bf16.msra.mxu0 %v580
    %732 = vmatprep.subr.bf16.mxu0 0
    %733 = vmatpush1.bf16.msra.mxu0 %v581
    %734 = vmatprep.subr.bf16.mxu0 0
    %735 = vmatpush1.bf16.msra.mxu0 %v582
    %736 = vmatprep.subr.bf16.mxu0 0
    %737 = vmatpush1.bf16.msra.mxu0 %v583
    %738 = vmatprep.subr.bf16.mxu0 0
    %739 = vmatpush1.bf16.msra.mxu0 %v584
    %740 = vmatprep.subr.bf16.mxu0 0
    %741 = vmatpush1.bf16.msra.mxu0 %v585
    %742 = vmatprep.subr.bf16.mxu0 0
    %743 = vmatpush1.bf16.msra.mxu0 %v586
    %744 = vmatprep.subr.bf16.mxu0 0
    %745 = vmatpush1.bf16.msra.mxu0 %v587
    %746 = vmatprep.subr.bf16.mxu0 0
    %747 = vmatpush1.bf16.msra.mxu0 %v588
    %748 = vmatprep.subr.bf16.mxu0 0
    %749 = vmatpush1.bf16.msra.mxu0 %v589
    %750 = vmatprep.subr.bf16.mxu0 0
    %751 = vmatpush1.bf16.msra.mxu0 %v590
    %752 = vmatprep.subr.bf16.mxu0 0
    %753 = vmatpush1.bf16.msra.mxu0 %v591
    %754 = vmatprep.subr.bf16.mxu0 0
    %755 = vmatpush1.bf16.msra.mxu0 %v592
    %756 = vmatprep.subr.bf16.mxu0 0
    %757 = vmatpush1.bf16.msra.mxu0 %v593
    %758 = vmatprep.subr.bf16.mxu0 0
    %759 = vmatpush1.bf16.msra.mxu0 %v594
    %760 = vmatprep.subr.bf16.mxu0 0
    %761 = vmatpush1.bf16.msra.mxu0 %v595
    %762 = vmatprep.mubr.bf16.mxu0 %v344
    %763 = vmatmul.mubr.bf16.gmra.mrb[0].mxu0 %v343
    %v764 = vpop.f32.mrb[0].mxu0
    %v765 = vadd.f32 %v725, %v764
    %v766 = vpop.f32.mrb[0].mxu0
    %v767 = vpop.f32.mrb[0].mxu0
    %v768 = vpop.f32.mrb[0].mxu0
    %769 = vdwg.mxu0
    %770 = vmatprep.subr.bf16.mxu0 0
    %771 = vmatpush1.bf16.msra.mxu0 %v596
    %772 = vmatprep.subr.bf16.mxu0 0
    %773 = vmatpush1.bf16.msra.mxu0 0
    %774 = vmatprep.subr.bf16.mxu0 0
    %775 = vmatpush1.bf16.msra.mxu0 0
    %776 = vmatprep.subr.bf16.mxu0 0
    %777 = vmatpush1.bf16.msra.mxu0 0
    %778 = vmatprep.subr.bf16.mxu0 0
    %779 = vmatpush1.bf16.msra.mxu0 0
    %780 = vmatprep.subr.bf16.mxu0 0
    %781 = vmatpush1.bf16.msra.mxu0 0
    %782 = vmatprep.subr.bf16.mxu0 0
    %783 = vmatpush1.bf16.msra.mxu0 0
    %784 = vmatprep.subr.bf16.mxu0 0
    %785 = vmatpush1.bf16.msra.mxu0 0
    %786 = vmatprep.subr.bf16.mxu0 0
    %787 = vmatpush1.bf16.msra.mxu0 0
    %788 = vmatprep.subr.bf16.mxu0 0
    %789 = vmatpush1.bf16.msra.mxu0 0
    %790 = vmatprep.subr.bf16.mxu0 0
    %791 = vmatpush1.bf16.msra.mxu0 0
    %792 = vmatprep.subr.bf16.mxu0 0
    %793 = vmatpush1.bf16.msra.mxu0 0
    %794 = vmatprep.subr.bf16.mxu0 0
    %795 = vmatpush1.bf16.msra.mxu0 0
    %796 = vmatprep.subr.bf16.mxu0 0
    %797 = vmatpush1.bf16.msra.mxu0 0
    %798 = vmatprep.subr.bf16.mxu0 0
    %799 = vmatpush1.bf16.msra.mxu0 0
    %800 = vmatprep.subr.bf16.mxu0 0
    %801 = vmatpush1.bf16.msra.mxu0 0
    %802 = vmatprep.mubr.bf16.mxu0 0
    %803 = vmatmul.mubr.bf16.gmra.mrb[0].mxu0 %v648
    %v804 = vpop.f32.mrb[0].mxu0
    %v805 = vadd.f32 %v765, %v804
    %v806 = vpop.f32.mrb[0].mxu0
    %v807 = vpop.f32.mrb[0].mxu0
    %v808 = vpop.f32.mrb[0].mxu0
    %809 = vdwg.mxu0
    %v810 = vmax.f32 %v805, 0.0
    %v811 = vpack.c.bf16 %v810, %v810
    %v812 = vld [vmem:[#allocation10] sm:$0xf]
    %v813 = vld [vmem:[#allocation10 + $0x4] sm:$0xf]
    %v814 = vld [vmem:[#allocation10 + $0x8] sm:$0xf]
    %v815 = vld [vmem:[#allocation10 + $0xc] sm:$0xf]
    %v816 = vld [vmem:[#allocation10 + $0x10] sm:$0xf]
    %v817 = vld [vmem:[#allocation10 + $0x14] sm:$0xf]
    %v818 = vld [vmem:[#allocation10 + $0x18] sm:$0xf]
    %v819 = vld [vmem:[#allocation10 + $0x1c] sm:$0xf]
    %v820 = vld [vmem:[#allocation10 + $0x20] sm:$0xf]
    %v821 = vld [vmem:[#allocation10 + $0x24] sm:$0xf]
    %v822 = vld [vmem:[#allocation10 + $0x28] sm:$0xf]
    %v823 = vld [vmem:[#allocation10 + $0x2c] sm:$0xf]
    %v824 = vld [vmem:[#allocation10 + $0x30] sm:$0xf]
    %v825 = vld [vmem:[#allocation10 + $0x34] sm:$0xf]
    %v826 = vld [vmem:[#allocation10 + $0x38] sm:$0xf]
    %v827 = vld [vmem:[#allocation10 + $0x3c] sm:$0xf]
    %v828 = vld [vmem:[#allocation12] sm:$0x1]
    %v830 = vlaneseq
    %v831 = vshrl.u32 %v830, 7
    %v832 = vsub.s32 0, %v831
    %v833 = vrot.slane %v828, %v832
    %v851 = vunpack.c.l.b16 %v812
    %v852 = vunpack.c.l.b16 %v813
    %v853 = vunpack.c.l.b16 %v814
    %v854 = vunpack.c.l.b16 %v815
    %v855 = vunpack.c.l.b16 %v816
    %v856 = vunpack.c.l.b16 %v817
    %v857 = vunpack.c.l.b16 %v818
    %v858 = vunpack.c.l.b16 %v819
    %v859 = vunpack.c.l.b16 %v820
    %v860 = vunpack.c.l.b16 %v821
    %v861 = vunpack.c.l.b16 %v822
    %v862 = vunpack.c.l.b16 %v823
    %v863 = vunpack.c.l.b16 %v824
    %v864 = vunpack.c.l.b16 %v825
    %v865 = vunpack.c.l.b16 %v826
    %v866 = vunpack.c.l.b16 %v827
    %v867 = vpack.c.b16 %v852, %v851
    %v868 = vpack.c.b16 %v854, %v853
    %v869 = vpack.c.b16 %v856, %v855
    %v870 = vpack.c.b16 %v858, %v857
    %v871 = vpack.c.b16 %v860, %v859
    %v872 = vpack.c.b16 %v862, %v861
    %v873 = vpack.c.b16 %v864, %v863
    %v874 = vpack.c.b16 %v866, %v865
    %883 = vmatprep.subr.bf16.mxu0 0
    %884 = vmatpush1.bf16.msra.mxu0 %v867
    %885 = vmatprep.subr.bf16.mxu0 0
    %886 = vmatpush1.bf16.msra.mxu0 %v868
    %887 = vmatprep.subr.bf16.mxu0 0
    %888 = vmatpush1.bf16.msra.mxu0 %v869
    %889 = vmatprep.subr.bf16.mxu0 0
    %890 = vmatpush1.bf16.msra.mxu0 %v870
    %891 = vmatprep.subr.bf16.mxu0 0
    %892 = vmatpush1.bf16.msra.mxu0 %v871
    %893 = vmatprep.subr.bf16.mxu0 0
    %894 = vmatpush1.bf16.msra.mxu0 %v872
    %895 = vmatprep.subr.bf16.mxu0 0
    %896 = vmatpush1.bf16.msra.mxu0 %v873
    %897 = vmatprep.subr.bf16.mxu0 0
    %898 = vmatpush1.bf16.msra.mxu0 %v874
    %899 = vmatprep.subr.bf16.mxu0 0
    %900 = vmatpush1.bf16.msra.mxu0 0
    %901 = vmatprep.subr.bf16.mxu0 0
    %902 = vmatpush1.bf16.msra.mxu0 0
    %903 = vmatprep.subr.bf16.mxu0 0
    %904 = vmatpush1.bf16.msra.mxu0 0
    %905 = vmatprep.subr.bf16.mxu0 0
    %906 = vmatpush1.bf16.msra.mxu0 0
    %907 = vmatprep.subr.bf16.mxu0 0
    %908 = vmatpush1.bf16.msra.mxu0 0
    %909 = vmatprep.subr.bf16.mxu0 0
    %910 = vmatpush1.bf16.msra.mxu0 0
    %911 = vmatprep.subr.bf16.mxu0 0
    %912 = vmatpush1.bf16.msra.mxu0 0
    %913 = vmatprep.subr.bf16.mxu0 0
    %914 = vmatpush1.bf16.msra.mxu0 0
    %915 = vmatprep.mubr.bf16.mxu0 0
    %916 = vmatmul.mubr.bf16.gmra.mrb[0].mxu0 %v811
    %v917 = vpop.f32.mrb[0].mxu0
    %v918 = vadd.f32 %v833, %v917
    %v919 = vpop.f32.mrb[0].mxu0
    %v920 = vpop.f32.mrb[0].mxu0
    %v921 = vpop.f32.mrb[0].mxu0
    %922 = vdwg.mxu0
    %v923 = vmax.f32 %v918, 0.0
    %v924 = vpack.c.bf16 %v923, %v923
    %v925 = vld [vmem:[#allocation13] sm:$0xf]
    %v926 = vld [vmem:[#allocation13 + $0x4] sm:$0xf]
    %v927 = vld [vmem:[#allocation13 + $0x8] sm:$0xf]
    %v928 = vld [vmem:[#allocation13 + $0xc] sm:$0xf]
    %v929 = vld [vmem:[#allocation13 + $0x10] sm:$0xf]
    %v930 = vld [vmem:[#allocation13 + $0x14] sm:$0xf]
    %v931 = vld [vmem:[#allocation13 + $0x18] sm:$0xf]
    %v932 = vld [vmem:[#allocation13 + $0x1c] sm:$0xf]
    %v933 = vld [vmem:[#allocation13 + $0x20] sm:$0xf]
    %v934 = vld [vmem:[#allocation13 + $0x24] sm:$0xf]
    %v935 = vld [vmem:[#allocation13 + $0x28] sm:$0xf]
    %v936 = vld [vmem:[#allocation13 + $0x2c] sm:$0xf]
    %v937 = vld [vmem:[#allocation13 + $0x30] sm:$0xf]
    %v938 = vld [vmem:[#allocation13 + $0x34] sm:$0xf]
    %v939 = vld [vmem:[#allocation13 + $0x38] sm:$0xf]
    %v940 = vld [vmem:[#allocation13 + $0x3c] sm:$0xf]
    %v941 = vld [vmem:[#allocation15] sm:$0x1]
    %v943 = vlaneseq
    %v944 = vshrl.u32 %v943, 7
    %v945 = vsub.s32 0, %v944
    %v946 = vrot.slane %v941, %v945
    %v964 = vunpack.c.l.b16 %v925
    %v965 = vunpack.c.l.b16 %v926
    %v966 = vunpack.c.l.b16 %v927
    %v967 = vunpack.c.l.b16 %v928
    %v968 = vunpack.c.l.b16 %v929
    %v969 = vunpack.c.l.b16 %v930
    %v970 = vunpack.c.l.b16 %v931
    %v971 = vunpack.c.l.b16 %v932
    %v972 = vunpack.c.l.b16 %v933
    %v973 = vunpack.c.l.b16 %v934
    %v974 = vunpack.c.l.b16 %v935
    %v975 = vunpack.c.l.b16 %v936
    %v976 = vunpack.c.l.b16 %v937
    %v977 = vunpack.c.l.b16 %v938
    %v978 = vunpack.c.l.b16 %v939
    %v979 = vunpack.c.l.b16 %v940
    %v980 = vpack.c.b16 %v965, %v964
    %v981 = vpack.c.b16 %v967, %v966
    %v982 = vpack.c.b16 %v969, %v968
    %v983 = vpack.c.b16 %v971, %v970
    %v984 = vpack.c.b16 %v973, %v972
    %v985 = vpack.c.b16 %v975, %v974
    %v986 = vpack.c.b16 %v977, %v976
    %v987 = vpack.c.b16 %v979, %v978
    %996 = vmatprep.subr.bf16.mxu0 0
    %997 = vmatpush1.bf16.msra.mxu0 %v980
    %998 = vmatprep.subr.bf16.mxu0 0
    %999 = vmatpush1.bf16.msra.mxu0 %v981
    %1000 = vmatprep.subr.bf16.mxu0 0
    %1001 = vmatpush1.bf16.msra.mxu0 %v982
    %1002 = vmatprep.subr.bf16.mxu0 0
    %1003 = vmatpush1.bf16.msra.mxu0 %v983
    %1004 = vmatprep.subr.bf16.mxu0 0
    %1005 = vmatpush1.bf16.msra.mxu0 %v984
    %1006 = vmatprep.subr.bf16.mxu0 0
    %1007 = vmatpush1.bf16.msra.mxu0 %v985
    %1008 = vmatprep.subr.bf16.mxu0 0
    %1009 = vmatpush1.bf16.msra.mxu0 %v986
    %1010 = vmatprep.subr.bf16.mxu0 0
    %1011 = vmatpush1.bf16.msra.mxu0 %v987
    %1012 = vmatprep.subr.bf16.mxu0 0
    %1013 = vmatpush1.bf16.msra.mxu0 0
    %1014 = vmatprep.subr.bf16.mxu0 0
    %1015 = vmatpush1.bf16.msra.mxu0 0
    %1016 = vmatprep.subr.bf16.mxu0 0
    %1017 = vmatpush1.bf16.msra.mxu0 0
    %1018 = vmatprep.subr.bf16.mxu0 0
    %1019 = vmatpush1.bf16.msra.mxu0 0
    %1020 = vmatprep.subr.bf16.mxu0 0
    %1021 = vmatpush1.bf16.msra.mxu0 0
    %1022 = vmatprep.subr.bf16.mxu0 0
    %1023 = vmatpush1.bf16.msra.mxu0 0
    %1024 = vmatprep.subr.bf16.mxu0 0
    %1025 = vmatpush1.bf16.msra.mxu0 0
    %1026 = vmatprep.subr.bf16.mxu0 0
    %1027 = vmatpush1.bf16.msra.mxu0 0
    %1028 = vmatprep.mubr.bf16.mxu0 0
    %1029 = vmatmul.mubr.bf16.gmra.mrb[0].mxu0 %v924
    %v1030 = vpop.f32.mrb[0].mxu0
    %v1031 = vadd.f32 %v946, %v1030
    %v1032 = vpop.f32.mrb[0].mxu0
    %v1033 = vpop.f32.mrb[0].mxu0
    %v1034 = vpop.f32.mrb[0].mxu0
    %1035 = vdwg.mxu0
    %v1036 = vmax.f32 %v1031, 0.0
    %v1037 = vlaneseq
    %v1038 = vand.u32 %v1037, 127
    %s1039 = sld [smem:[#allocation2]]
    %v1040 = vstv %s1039
    %vm1041 = vcmp.eq.s32.totalorder %v1038, %v1040
    %s1042 = sld [smem:[#allocation3]]
    %v1043 = vstv %s1042
    %v1044 = vadd.f32 %v1036, %v1043
    %v1045 = vsel %vm1041, %v1044, %v1036
    %vm1046 = vcmask 261120
    %1047 = vst.msk [vmem:[#allocation25] sm:$0xff] %vm1046, %v1045
    %v1048 = vpack.c.bf16 %v1045, %v1045
    %v1049 = vld [vmem:[#allocation16] sm:$0xf]
    %v1050 = vld [vmem:[#allocation16 + $0x4] sm:$0xf]
    %v1051 = vld [vmem:[#allocation16 + $0x8] sm:$0xf]
    %v1052 = vld [vmem:[#allocation16 + $0xc] sm:$0xf]
    %v1053 = vld [vmem:[#allocation16 + $0x10] sm:$0xf]
    %v1054 = vld [vmem:[#allocation16 + $0x14] sm:$0xf]
    %v1055 = vld [vmem:[#allocation16 + $0x18] sm:$0xf]
    %v1056 = vld [vmem:[#allocation16 + $0x1c] sm:$0xf]
    %v1057 = vld [vmem:[#allocation16 + $0x20] sm:$0xf]
    %v1058 = vld [vmem:[#allocation16 + $0x24] sm:$0xf]
    %v1059 = vld [vmem:[#allocation16 + $0x28] sm:$0xf]
    %v1060 = vld [vmem:[#allocation16 + $0x2c] sm:$0xf]
    %v1061 = vld [vmem:[#allocation16 + $0x30] sm:$0xf]
    %v1062 = vld [vmem:[#allocation16 + $0x34] sm:$0xf]
    %v1063 = vld [vmem:[#allocation16 + $0x38] sm:$0xf]
    %v1064 = vld [vmem:[#allocation16 + $0x3c] sm:$0xf]
    %v1065 = vld [vmem:[#allocation18] sm:$0x1]
    %v1067 = vlaneseq
    %v1068 = vshrl.u32 %v1067, 7
    %v1069 = vsub.s32 0, %v1068
    %v1070 = vrot.slane %v1065, %v1069
    %v1088 = vunpack.c.l.b16 %v1049
    %v1089 = vunpack.c.l.b16 %v1050
    %v1090 = vunpack.c.l.b16 %v1051
    %v1091 = vunpack.c.l.b16 %v1052
    %v1092 = vunpack.c.l.b16 %v1053
    %v1093 = vunpack.c.l.b16 %v1054
    %v1094 = vunpack.c.l.b16 %v1055
    %v1095 = vunpack.c.l.b16 %v1056
    %v1096 = vunpack.c.l.b16 %v1057
    %v1097 = vunpack.c.l.b16 %v1058
    %v1098 = vunpack.c.l.b16 %v1059
    %v1099 = vunpack.c.l.b16 %v1060
    %v1100 = vunpack.c.l.b16 %v1061
    %v1101 = vunpack.c.l.b16 %v1062
    %v1102 = vunpack.c.l.b16 %v1063
    %v1103 = vunpack.c.l.b16 %v1064
    %v1104 = vpack.c.b16 %v1089, %v1088
    %v1105 = vpack.c.b16 %v1091, %v1090
    %v1106 = vpack.c.b16 %v1093, %v1092
    %v1107 = vpack.c.b16 %v1095, %v1094
    %v1108 = vpack.c.b16 %v1097, %v1096
    %v1109 = vpack.c.b16 %v1099, %v1098
    %v1110 = vpack.c.b16 %v1101, %v1100
    %v1111 = vpack.c.b16 %v1103, %v1102
    %1120 = vmatprep.subr.bf16.mxu0 0
    %1121 = vmatpush1.bf16.msra.mxu0 %v1104
    %1122 = vmatprep.subr.bf16.mxu0 0
    %1123 = vmatpush1.bf16.msra.mxu0 %v1105
    %1124 = vmatprep.subr.bf16.mxu0 0
    %1125 = vmatpush1.bf16.msra.mxu0 %v1106
    %1126 = vmatprep.subr.bf16.mxu0 0
    %1127 = vmatpush1.bf16.msra.mxu0 %v1107
    %1128 = vmatprep.subr.bf16.mxu0 0
    %1129 = vmatpush1.bf16.msra.mxu0 %v1108
    %1130 = vmatprep.subr.bf16.mxu0 0
    %1131 = vmatpush1.bf16.msra.mxu0 %v1109
    %1132 = vmatprep.subr.bf16.mxu0 0
    %1133 = vmatpush1.bf16.msra.mxu0 %v1110
    %1134 = vmatprep.subr.bf16.mxu0 0
    %1135 = vmatpush1.bf16.msra.mxu0 %v1111
    %1136 = vmatprep.subr.bf16.mxu0 0
    %1137 = vmatpush1.bf16.msra.mxu0 0
    %1138 = vmatprep.subr.bf16.mxu0 0
    %1139 = vmatpush1.bf16.msra.mxu0 0
    %1140 = vmatprep.subr.bf16.mxu0 0
    %1141 = vmatpush1.bf16.msra.mxu0 0
    %1142 = vmatprep.subr.bf16.mxu0 0
    %1143 = vmatpush1.bf16.msra.mxu0 0
    %1144 = vmatprep.subr.bf16.mxu0 0
    %1145 = vmatpush1.bf16.msra.mxu0 0
    %1146 = vmatprep.subr.bf16.mxu0 0
    %1147 = vmatpush1.bf16.msra.mxu0 0
    %1148 = vmatprep.subr.bf16.mxu0 0
    %1149 = vmatpush1.bf16.msra.mxu0 0
    %1150 = vmatprep.subr.bf16.mxu0 0
    %1151 = vmatpush1.bf16.msra.mxu0 0
    %1152 = vmatprep.mubr.bf16.mxu0 0
    %1153 = vmatmul.mubr.bf16.gmra.mrb[0].mxu0 %v1048
    %v1154 = vpop.f32.mrb[0].mxu0
    %v1155 = vadd.f32 %v1070, %v1154
    %v1156 = vpop.f32.mrb[0].mxu0
    %v1157 = vpop.f32.mrb[0].mxu0
    %v1158 = vpop.f32.mrb[0].mxu0
    %1159 = vdwg.mxu0
    %v1160 = vmax.f32 %v1155, 0.0
    %v1161 = vpack.c.bf16 %v1160, %v1160
    %v1162 = vld [vmem:[#allocation19] sm:$0xf]
    %v1163 = vld [vmem:[#allocation19 + $0x4] sm:$0xf]
    %v1164 = vld [vmem:[#allocation19 + $0x8] sm:$0xf]
    %v1165 = vld [vmem:[#allocation19 + $0xc] sm:$0xf]
    %v1166 = vld [vmem:[#allocation19 + $0x10] sm:$0xf]
    %v1167 = vld [vmem:[#allocation19 + $0x14] sm:$0xf]
    %v1168 = vld [vmem:[#allocation19 + $0x18] sm:$0xf]
    %v1169 = vld [vmem:[#allocation19 + $0x1c] sm:$0xf]
    %v1170 = vld [vmem:[#allocation19 + $0x20] sm:$0xf]
    %v1171 = vld [vmem:[#allocation19 + $0x24] sm:$0xf]
    %v1172 = vld [vmem:[#allocation19 + $0x28] sm:$0xf]
    %v1173 = vld [vmem:[#allocation19 + $0x2c] sm:$0xf]
    %v1174 = vld [vmem:[#allocation19 + $0x30] sm:$0xf]
    %v1175 = vld [vmem:[#allocation19 + $0x34] sm:$0xf]
    %v1176 = vld [vmem:[#allocation19 + $0x38] sm:$0xf]
    %v1177 = vld [vmem:[#allocation19 + $0x3c] sm:$0xf]
    %v1178 = vld [vmem:[#allocation21] sm:$0x1]
    %v1180 = vlaneseq
    %v1181 = vshrl.u32 %v1180, 7
    %v1182 = vsub.s32 0, %v1181
    %v1183 = vrot.slane %v1178, %v1182
    %v1201 = vunpack.c.l.b16 %v1162
    %v1202 = vunpack.c.l.b16 %v1163
    %v1203 = vunpack.c.l.b16 %v1164
    %v1204 = vunpack.c.l.b16 %v1165
    %v1205 = vunpack.c.l.b16 %v1166
    %v1206 = vunpack.c.l.b16 %v1167
    %v1207 = vunpack.c.l.b16 %v1168
    %v1208 = vunpack.c.l.b16 %v1169
    %v1209 = vunpack.c.l.b16 %v1170
    %v1210 = vunpack.c.l.b16 %v1171
    %v1211 = vunpack.c.l.b16 %v1172
    %v1212 = vunpack.c.l.b16 %v1173
    %v1213 = vunpack.c.l.b16 %v1174
    %v1214 = vunpack.c.l.b16 %v1175
    %v1215 = vunpack.c.l.b16 %v1176
    %v1216 = vunpack.c.l.b16 %v1177
    %v1217 = vpack.c.b16 %v1202, %v1201
    %v1218 = vpack.c.b16 %v1204, %v1203
    %v1219 = vpack.c.b16 %v1206, %v1205
    %v1220 = vpack.c.b16 %v1208, %v1207
    %v1221 = vpack.c.b16 %v1210, %v1209
    %v1222 = vpack.c.b16 %v1212, %v1211
    %v1223 = vpack.c.b16 %v1214, %v1213
    %v1224 = vpack.c.b16 %v1216, %v1215
    %1233 = vmatprep.subr.bf16.mxu0 0
    %1234 = vmatpush1.bf16.msra.mxu0 %v1217
    %1235 = vmatprep.subr.bf16.mxu0 0
    %1236 = vmatpush1.bf16.msra.mxu0 %v1218
    %1237 = vmatprep.subr.bf16.mxu0 0
    %1238 = vmatpush1.bf16.msra.mxu0 %v1219
    %1239 = vmatprep.subr.bf16.mxu0 0
    %1240 = vmatpush1.bf16.msra.mxu0 %v1220
    %1241 = vmatprep.subr.bf16.mxu0 0
    %1242 = vmatpush1.bf16.msra.mxu0 %v1221
    %1243 = vmatprep.subr.bf16.mxu0 0
    %1244 = vmatpush1.bf16.msra.mxu0 %v1222
    %1245 = vmatprep.subr.bf16.mxu0 0
    %1246 = vmatpush1.bf16.msra.mxu0 %v1223
    %1247 = vmatprep.subr.bf16.mxu0 0
    %1248 = vmatpush1.bf16.msra.mxu0 %v1224
    %1249 = vmatprep.subr.bf16.mxu0 0
    %1250 = vmatpush1.bf16.msra.mxu0 0
    %1251 = vmatprep.subr.bf16.mxu0 0
    %1252 = vmatpush1.bf16.msra.mxu0 0
    %1253 = vmatprep.subr.bf16.mxu0 0
    %1254 = vmatpush1.bf16.msra.mxu0 0
    %1255 = vmatprep.subr.bf16.mxu0 0
    %1256 = vmatpush1.bf16.msra.mxu0 0
    %1257 = vmatprep.subr.bf16.mxu0 0
    %1258 = vmatpush1.bf16.msra.mxu0 0
    %1259 = vmatprep.subr.bf16.mxu0 0
    %1260 = vmatpush1.bf16.msra.mxu0 0
    %1261 = vmatprep.subr.bf16.mxu0 0
    %1262 = vmatpush1.bf16.msra.mxu0 0
    %1263 = vmatprep.subr.bf16.mxu0 0
    %1264 = vmatpush1.bf16.msra.mxu0 0
    %1265 = vmatprep.mubr.bf16.mxu0 0
    %1266 = vmatmul.mubr.bf16.gmra.mrb[0].mxu0 %v1161
    %v1267 = vpop.f32.mrb[0].mxu0
    %v1268 = vadd.f32 %v1183, %v1267
    %v1269 = vpop.f32.mrb[0].mxu0
    %v1270 = vpop.f32.mrb[0].mxu0
    %v1271 = vpop.f32.mrb[0].mxu0
    %1272 = vdwg.mxu0
    %v1273 = vmax.f32 %v1268, 0.0
    %v1274 = vpack.c.bf16 %v1273, %v1273
    %v1275 = vld [vmem:[#allocation22] sm:$0xff]
    %v1276 = vld [vmem:[#allocation22 + $0x8] sm:$0xff]
    %v1277 = vld [vmem:[#allocation22 + $0x10] sm:$0xff]
    %v1278 = vld [vmem:[#allocation22 + $0x18] sm:$0xf]
    %v1279 = vld [vmem:[#allocation22 + $0x1c] sm:$0xff]
    %v1280 = vld [vmem:[#allocation22 + $0x24] sm:$0xff]
    %v1281 = vld [vmem:[#allocation22 + $0x2c] sm:$0xff]
    %v1282 = vld [vmem:[#allocation22 + $0x34] sm:$0xf]
    %v1283 = vld [vmem:[#allocation22 + $0x38] sm:$0xff]
    %v1284 = vld [vmem:[#allocation22 + $0x40] sm:$0xff]
    %v1285 = vld [vmem:[#allocation22 + $0x48] sm:$0xff]
    %v1286 = vld [vmem:[#allocation22 + $0x50] sm:$0xf]
    %v1287 = vld [vmem:[#allocation22 + $0x54] sm:$0xff]
    %v1288 = vld [vmem:[#allocation22 + $0x5c] sm:$0xff]
    %v1289 = vld [vmem:[#allocation22 + $0x64] sm:$0xff]
    %v1290 = vld [vmem:[#allocation22 + $0x6c] sm:$0xf]
    %v1291 = vld [vmem:[#allocation22 + $0x70] sm:$0xff]
    %v1292 = vld [vmem:[#allocation22 + $0x78] sm:$0xff]
    %v1293 = vld [vmem:[#allocation22 + $0x80] sm:$0xff]
    %v1294 = vld [vmem:[#allocation22 + $0x88] sm:$0xf]
    %v1295 = vld [vmem:[#allocation22 + $0x8c] sm:$0xff]
    %v1296 = vld [vmem:[#allocation22 + $0x94] sm:$0xff]
    %v1297 = vld [vmem:[#allocation22 + $0x9c] sm:$0xff]
    %v1298 = vld [vmem:[#allocation22 + $0xa4] sm:$0xf]
    %v1299 = vld [vmem:[#allocation22 + $0xa8] sm:$0xff]
    %v1300 = vld [vmem:[#allocation22 + $0xb0] sm:$0xff]
    %v1301 = vld [vmem:[#allocation22 + $0xb8] sm:$0xff]
    %v1302 = vld [vmem:[#allocation22 + $0xc0] sm:$0xf]
    %v1303 = vld [vmem:[#allocation22 + $0xc4] sm:$0xff]
    %v1304 = vld [vmem:[#allocation22 + $0xcc] sm:$0xff]
    %v1305 = vld [vmem:[#allocation22 + $0xd4] sm:$0xff]
    %v1306 = vld [vmem:[#allocation22 + $0xdc] sm:$0xf]
    %v1307 = vld [vmem:[#allocation22 + $0xe0] sm:$0xff]
    %v1308 = vld [vmem:[#allocation22 + $0xe8] sm:$0xff]
    %v1309 = vld [vmem:[#allocation22 + $0xf0] sm:$0xff]
    %v1310 = vld [vmem:[#allocation22 + $0xf8] sm:$0xf]
    %v1311 = vld [vmem:[#allocation22 + $0xfc] sm:$0xff]
    %v1312 = vld [vmem:[#allocation22 + $0x104] sm:$0xff]
    %v1313 = vld [vmem:[#allocation22 + $0x10c] sm:$0xff]
    %v1314 = vld [vmem:[#allocation22 + $0x114] sm:$0xf]
    %v1315 = vld [vmem:[#allocation22 + $0x118] sm:$0xff]
    %v1316 = vld [vmem:[#allocation22 + $0x120] sm:$0xff]
    %v1317 = vld [vmem:[#allocation22 + $0x128] sm:$0xff]
    %v1318 = vld [vmem:[#allocation22 + $0x130] sm:$0xf]
    %v1319 = vld [vmem:[#allocation22 + $0x134] sm:$0xff]
    %v1320 = vld [vmem:[#allocation22 + $0x13c] sm:$0xff]
    %v1321 = vld [vmem:[#allocation22 + $0x144] sm:$0xff]
    %v1322 = vld [vmem:[#allocation22 + $0x14c] sm:$0xf]
    %v1323 = vld [vmem:[#allocation22 + $0x150] sm:$0xff]
    %v1324 = vld [vmem:[#allocation22 + $0x158] sm:$0xff]
    %v1325 = vld [vmem:[#allocation22 + $0x160] sm:$0xff]
    %v1326 = vld [vmem:[#allocation22 + $0x168] sm:$0xf]
    %v1327 = vld [vmem:[#allocation22 + $0x16c] sm:$0xff]
    %v1328 = vld [vmem:[#allocation22 + $0x174] sm:$0xff]
    %v1329 = vld [vmem:[#allocation22 + $0x17c] sm:$0xff]
    %v1330 = vld [vmem:[#allocation22 + $0x184] sm:$0xf]
    %v1331 = vld [vmem:[#allocation22 + $0x188] sm:$0xff]
    %v1332 = vld [vmem:[#allocation22 + $0x190] sm:$0xff]
    %v1333 = vld [vmem:[#allocation22 + $0x198] sm:$0xff]
    %v1334 = vld [vmem:[#allocation22 + $0x1a0] sm:$0xf]
    %v1335 = vld [vmem:[#allocation22 + $0x1a4] sm:$0xff]
    %v1336 = vld [vmem:[#allocation22 + $0x1ac] sm:$0xff]
    %v1337 = vld [vmem:[#allocation22 + $0x1b4] sm:$0xff]
    %v1338 = vld [vmem:[#allocation22 + $0x1bc] sm:$0xf]
    %v1339 = vld [vmem:[#allocation24] sm:$0x7f]
    %v1341 = vlaneseq
    %v1342 = vshrl.u32 %v1341, 7
    %v1343 = vsub.s32 0, %v1342
    %v1344 = vrot.slane %v1339, %v1343
    %v1345 = vlaneseq
    %v1346 = vshrl.u32 %v1345, 7
    %v1347 = vsub.s32 1, %v1346
    %v1348 = vrot.slane %v1339, %v1347
    %v1349 = vlaneseq
    %v1350 = vshrl.u32 %v1349, 7
    %v1351 = vsub.s32 2, %v1350
    %v1352 = vrot.slane %v1339, %v1351
    %v1353 = vlaneseq
    %v1354 = vshrl.u32 %v1353, 7
    %v1355 = vsub.s32 3, %v1354
    %v1356 = vrot.slane %v1339, %v1355
    %v1357 = vlaneseq
    %v1358 = vshrl.u32 %v1357, 7
    %v1359 = vsub.s32 4, %v1358
    %v1360 = vrot.slane %v1339, %v1359
    %v1361 = vlaneseq
    %v1362 = vshrl.u32 %v1361, 7
    %v1363 = vsub.s32 5, %v1362
    %v1364 = vrot.slane %v1339, %v1363
    %v1365 = vlaneseq
    %v1366 = vshrl.u32 %v1365, 7
    %v1367 = vsub.s32 6, %v1366
    %v1368 = vrot.slane %v1339, %v1367
    %v1440 = vunpack.c.l.b16 %v1275
    %v1441 = vunpack.c.h.b16 %v1275
    %v1442 = vunpack.c.l.b16 %v1276
    %v1443 = vunpack.c.h.b16 %v1276
    %v1444 = vunpack.c.l.b16 %v1277
    %v1445 = vunpack.c.h.b16 %v1277
    %v1446 = vunpack.c.l.b16 %v1278
    %v1447 = vunpack.c.l.b16 %v1279
    %v1448 = vunpack.c.h.b16 %v1279
    %v1449 = vunpack.c.l.b16 %v1280
    %v1450 = vunpack.c.h.b16 %v1280
    %v1451 = vunpack.c.l.b16 %v1281
    %v1452 = vunpack.c.h.b16 %v1281
    %v1453 = vunpack.c.l.b16 %v1282
    %v1454 = vunpack.c.l.b16 %v1283
    %v1455 = vunpack.c.h.b16 %v1283
    %v1456 = vunpack.c.l.b16 %v1284
    %v1457 = vunpack.c.h.b16 %v1284
    %v1458 = vunpack.c.l.b16 %v1285
    %v1459 = vunpack.c.h.b16 %v1285
    %v1460 = vunpack.c.l.b16 %v1286
    %v1461 = vunpack.c.l.b16 %v1287
    %v1462 = vunpack.c.h.b16 %v1287
    %v1463 = vunpack.c.l.b16 %v1288
    %v1464 = vunpack.c.h.b16 %v1288
    %v1465 = vunpack.c.l.b16 %v1289
    %v1466 = vunpack.c.h.b16 %v1289
    %v1467 = vunpack.c.l.b16 %v1290
    %v1468 = vunpack.c.l.b16 %v1291
    %v1469 = vunpack.c.h.b16 %v1291
    %v1470 = vunpack.c.l.b16 %v1292
    %v1471 = vunpack.c.h.b16 %v1292
    %v1472 = vunpack.c.l.b16 %v1293
    %v1473 = vunpack.c.h.b16 %v1293
    %v1474 = vunpack.c.l.b16 %v1294
    %v1475 = vunpack.c.l.b16 %v1295
    %v1476 = vunpack.c.h.b16 %v1295
    %v1477 = vunpack.c.l.b16 %v1296
    %v1478 = vunpack.c.h.b16 %v1296
    %v1479 = vunpack.c.l.b16 %v1297
    %v1480 = vunpack.c.h.b16 %v1297
    %v1481 = vunpack.c.l.b16 %v1298
    %v1482 = vunpack.c.l.b16 %v1299
    %v1483 = vunpack.c.h.b16 %v1299
    %v1484 = vunpack.c.l.b16 %v1300
    %v1485 = vunpack.c.h.b16 %v1300
    %v1486 = vunpack.c.l.b16 %v1301
    %v1487 = vunpack.c.h.b16 %v1301
    %v1488 = vunpack.c.l.b16 %v1302
    %v1489 = vunpack.c.l.b16 %v1303
    %v1490 = vunpack.c.h.b16 %v1303
    %v1491 = vunpack.c.l.b16 %v1304
    %v1492 = vunpack.c.h.b16 %v1304
    %v1493 = vunpack.c.l.b16 %v1305
    %v1494 = vunpack.c.h.b16 %v1305
    %v1495 = vunpack.c.l.b16 %v1306
    %v1496 = vunpack.c.l.b16 %v1307
    %v1497 = vunpack.c.h.b16 %v1307
    %v1498 = vunpack.c.l.b16 %v1308
    %v1499 = vunpack.c.h.b16 %v1308
    %v1500 = vunpack.c.l.b16 %v1309
    %v1501 = vunpack.c.h.b16 %v1309
    %v1502 = vunpack.c.l.b16 %v1310
    %v1503 = vunpack.c.l.b16 %v1311
    %v1504 = vunpack.c.h.b16 %v1311
    %v1505 = vunpack.c.l.b16 %v1312
    %v1506 = vunpack.c.h.b16 %v1312
    %v1507 = vunpack.c.l.b16 %v1313
    %v1508 = vunpack.c.h.b16 %v1313
    %v1509 = vunpack.c.l.b16 %v1314
    %v1510 = vunpack.c.l.b16 %v1315
    %v1511 = vunpack.c.h.b16 %v1315
    %v1512 = vunpack.c.l.b16 %v1316
    %v1513 = vunpack.c.h.b16 %v1316
    %v1514 = vunpack.c.l.b16 %v1317
    %v1515 = vunpack.c.h.b16 %v1317
    %v1516 = vunpack.c.l.b16 %v1318
    %v1517 = vunpack.c.l.b16 %v1319
    %v1518 = vunpack.c.h.b16 %v1319
    %v1519 = vunpack.c.l.b16 %v1320
    %v1520 = vunpack.c.h.b16 %v1320
    %v1521 = vunpack.c.l.b16 %v1321
    %v1522 = vunpack.c.h.b16 %v1321
    %v1523 = vunpack.c.l.b16 %v1322
    %v1524 = vunpack.c.l.b16 %v1323
    %v1525 = vunpack.c.h.b16 %v1323
    %v1526 = vunpack.c.l.b16 %v1324
    %v1527 = vunpack.c.h.b16 %v1324
    %v1528 = vunpack.c.l.b16 %v1325
    %v1529 = vunpack.c.h.b16 %v1325
    %v1530 = vunpack.c.l.b16 %v1326
    %v1531 = vunpack.c.l.b16 %v1327
    %v1532 = vunpack.c.h.b16 %v1327
    %v1533 = vunpack.c.l.b16 %v1328
    %v1534 = vunpack.c.h.b16 %v1328
    %v1535 = vunpack.c.l.b16 %v1329
    %v1536 = vunpack.c.h.b16 %v1329
    %v1537 = vunpack.c.l.b16 %v1330
    %v1538 = vunpack.c.l.b16 %v1331
    %v1539 = vunpack.c.h.b16 %v1331
    %v1540 = vunpack.c.l.b16 %v1332
    %v1541 = vunpack.c.h.b16 %v1332
    %v1542 = vunpack.c.l.b16 %v1333
    %v1543 = vunpack.c.h.b16 %v1333
    %v1544 = vunpack.c.l.b16 %v1334
    %v1545 = vunpack.c.l.b16 %v1335
    %v1546 = vunpack.c.h.b16 %v1335
    %v1547 = vunpack.c.l.b16 %v1336
    %v1548 = vunpack.c.h.b16 %v1336
    %v1549 = vunpack.c.l.b16 %v1337
    %v1550 = vunpack.c.h.b16 %v1337
    %v1551 = vunpack.c.l.b16 %v1338
    %v1552 = vpack.c.b16 %v1447, %v1440
    %v1553 = vpack.c.b16 %v1448, %v1441
    %v1554 = vpack.c.b16 %v1449, %v1442
    %v1555 = vpack.c.b16 %v1450, %v1443
    %v1556 = vpack.c.b16 %v1451, %v1444
    %v1557 = vpack.c.b16 %v1452, %v1445
    %v1558 = vpack.c.b16 %v1453, %v1446
    %v1559 = vpack.c.b16 %v1461, %v1454
    %v1560 = vpack.c.b16 %v1462, %v1455
    %v1561 = vpack.c.b16 %v1463, %v1456
    %v1562 = vpack.c.b16 %v1464, %v1457
    %v1563 = vpack.c.b16 %v1465, %v1458
    %v1564 = vpack.c.b16 %v1466, %v1459
    %v1565 = vpack.c.b16 %v1467, %v1460
    %v1566 = vpack.c.b16 %v1475, %v1468
    %v1567 = vpack.c.b16 %v1476, %v1469
    %v1568 = vpack.c.b16 %v1477, %v1470
    %v1569 = vpack.c.b16 %v1478, %v1471
    %v1570 = vpack.c.b16 %v1479, %v1472
    %v1571 = vpack.c.b16 %v1480, %v1473
    %v1572 = vpack.c.b16 %v1481, %v1474
    %v1573 = vpack.c.b16 %v1489, %v1482
    %v1574 = vpack.c.b16 %v1490, %v1483
    %v1575 = vpack.c.b16 %v1491, %v1484
    %v1576 = vpack.c.b16 %v1492, %v1485
    %v1577 = vpack.c.b16 %v1493, %v1486
    %v1578 = vpack.c.b16 %v1494, %v1487
    %v1579 = vpack.c.b16 %v1495, %v1488
    %v1580 = vpack.c.b16 %v1503, %v1496
    %v1581 = vpack.c.b16 %v1504, %v1497
    %v1582 = vpack.c.b16 %v1505, %v1498
    %v1583 = vpack.c.b16 %v1506, %v1499
    %v1584 = vpack.c.b16 %v1507, %v1500
    %v1585 = vpack.c.b16 %v1508, %v1501
    %v1586 = vpack.c.b16 %v1509, %v1502
    %v1587 = vpack.c.b16 %v1517, %v1510
    %v1588 = vpack.c.b16 %v1518, %v1511
    %v1589 = vpack.c.b16 %v1519, %v1512
    %v1590 = vpack.c.b16 %v1520, %v1513
    %v1591 = vpack.c.b16 %v1521, %v1514
    %v1592 = vpack.c.b16 %v1522, %v1515
    %v1593 = vpack.c.b16 %v1523, %v1516
    %v1594 = vpack.c.b16 %v1531, %v1524
    %v1595 = vpack.c.b16 %v1532, %v1525
    %v1596 = vpack.c.b16 %v1533, %v1526
    %v1597 = vpack.c.b16 %v1534, %v1527
    %v1598 = vpack.c.b16 %v1535, %v1528
    %v1599 = vpack.c.b16 %v1536, %v1529
    %v1600 = vpack.c.b16 %v1537, %v1530
    %v1601 = vpack.c.b16 %v1545, %v1538
    %v1602 = vpack.c.b16 %v1546, %v1539
    %v1603 = vpack.c.b16 %v1547, %v1540
    %v1604 = vpack.c.b16 %v1548, %v1541
    %v1605 = vpack.c.b16 %v1549, %v1542
    %v1606 = vpack.c.b16 %v1550, %v1543
    %v1607 = vpack.c.b16 %v1551, %v1544
    %1664 = vmatprep.subr.bf16.mxu0 %v1553
    %1665 = vmatpush1.bf16.msra.mxu0 %v1552
    %1666 = vmatprep.subr.bf16.mxu0 %v1560
    %1667 = vmatpush1.bf16.msra.mxu0 %v1559
    %1668 = vmatprep.subr.bf16.mxu0 %v1567
    %1669 = vmatpush1.bf16.msra.mxu0 %v1566
    %1670 = vmatprep.subr.bf16.mxu0 %v1574
    %1671 = vmatpush1.bf16.msra.mxu0 %v1573
    %1672 = vmatprep.subr.bf16.mxu0 %v1581
    %1673 = vmatpush1.bf16.msra.mxu0 %v1580
    %1674 = vmatprep.subr.bf16.mxu0 %v1588
    %1675 = vmatpush1.bf16.msra.mxu0 %v1587
    %1676 = vmatprep.subr.bf16.mxu0 %v1595
    %1677 = vmatpush1.bf16.msra.mxu0 %v1594
    %1678 = vmatprep.subr.bf16.mxu0 %v1602
    %1679 = vmatpush1.bf16.msra.mxu0 %v1601
    %1680 = vmatprep.subr.bf16.mxu0 0
    %1681 = vmatpush1.bf16.msra.mxu0 0
    %1682 = vmatprep.subr.bf16.mxu0 0
    %1683 = vmatpush1.bf16.msra.mxu0 0
    %1684 = vmatprep.subr.bf16.mxu0 0
    %1685 = vmatpush1.bf16.msra.mxu0 0
    %1686 = vmatprep.subr.bf16.mxu0 0
    %1687 = vmatpush1.bf16.msra.mxu0 0
    %1688 = vmatprep.subr.bf16.mxu0 0
    %1689 = vmatpush1.bf16.msra.mxu0 0
    %1690 = vmatprep.subr.bf16.mxu0 0
    %1691 = vmatpush1.bf16.msra.mxu0 0
    %1692 = vmatprep.subr.bf16.mxu0 0
    %1693 = vmatpush1.bf16.msra.mxu0 0
    %1694 = vmatprep.subr.bf16.mxu0 0
    %1695 = vmatpush1.bf16.msra.mxu0 0
    %1696 = vmatprep.mubr.bf16.mxu0 0
    %1697 = vmatmul.mubr.bf16.gmra.mrb[0].mxu0 %v1274
    %v1698 = vpop.f32.mrb[0].mxu0
    %v1699 = vadd.f32 %v1344, %v1698
    %v1700 = vpop.f32.mrb[0].mxu0
    %v1701 = vadd.f32 %v1348, %v1700
    %v1702 = vpop.f32.mrb[0].mxu0
    %v1703 = vpop.f32.mrb[0].mxu0
    %1704 = vdwg.mxu0
    %1705 = vmatprep.subr.bf16.mxu0 %v1555
    %1706 = vmatpush1.bf16.msra.mxu0 %v1554
    %1707 = vmatprep.subr.bf16.mxu0 %v1562
    %1708 = vmatpush1.bf16.msra.mxu0 %v1561
    %1709 = vmatprep.subr.bf16.mxu0 %v1569
    %1710 = vmatpush1.bf16.msra.mxu0 %v1568
    %1711 = vmatprep.subr.bf16.mxu0 %v1576
    %1712 = vmatpush1.bf16.msra.mxu0 %v1575
    %1713 = vmatprep.subr.bf16.mxu0 %v1583
    %1714 = vmatpush1.bf16.msra.mxu0 %v1582
    %1715 = vmatprep.subr.bf16.mxu0 %v1590
    %1716 = vmatpush1.bf16.msra.mxu0 %v1589
    %1717 = vmatprep.subr.bf16.mxu0 %v1597
    %1718 = vmatpush1.bf16.msra.mxu0 %v1596
    %1719 = vmatprep.subr.bf16.mxu0 %v1604
    %1720 = vmatpush1.bf16.msra.mxu0 %v1603
    %1721 = vmatprep.subr.bf16.mxu0 0
    %1722 = vmatpush1.bf16.msra.mxu0 0
    %1723 = vmatprep.subr.bf16.mxu0 0
    %1724 = vmatpush1.bf16.msra.mxu0 0
    %1725 = vmatprep.subr.bf16.mxu0 0
    %1726 = vmatpush1.bf16.msra.mxu0 0
    %1727 = vmatprep.subr.bf16.mxu0 0
    %1728 = vmatpush1.bf16.msra.mxu0 0
    %1729 = vmatprep.subr.bf16.mxu0 0
    %1730 = vmatpush1.bf16.msra.mxu0 0
    %1731 = vmatprep.subr.bf16.mxu0 0
    %1732 = vmatpush1.bf16.msra.mxu0 0
    %1733 = vmatprep.subr.bf16.mxu0 0
    %1734 = vmatpush1.bf16.msra.mxu0 0
    %1735 = vmatprep.subr.bf16.mxu0 0
    %1736 = vmatpush1.bf16.msra.mxu0 0
    %1737 = vmatprep.mubr.bf16.mxu0 0
    %1738 = vmatmul.mubr.bf16.gmra.mrb[0].mxu0 %v1274
    %v1739 = vpop.f32.mrb[0].mxu0
    %v1740 = vadd.f32 %v1352, %v1739
    %v1741 = vpop.f32.mrb[0].mxu0
    %v1742 = vadd.f32 %v1356, %v1741
    %v1743 = vpop.f32.mrb[0].mxu0
    %v1744 = vpop.f32.mrb[0].mxu0
    %1745 = vdwg.mxu0
    %1746 = vmatprep.subr.bf16.mxu0 %v1557
    %1747 = vmatpush1.bf16.msra.mxu0 %v1556
    %1748 = vmatprep.subr.bf16.mxu0 %v1564
    %1749 = vmatpush1.bf16.msra.mxu0 %v1563
    %1750 = vmatprep.subr.bf16.mxu0 %v1571
    %1751 = vmatpush1.bf16.msra.mxu0 %v1570
    %1752 = vmatprep.subr.bf16.mxu0 %v1578
    %1753 = vmatpush1.bf16.msra.mxu0 %v1577
    %1754 = vmatprep.subr.bf16.mxu0 %v1585
    %1755 = vmatpush1.bf16.msra.mxu0 %v1584
    %1756 = vmatprep.subr.bf16.mxu0 %v1592
    %1757 = vmatpush1.bf16.msra.mxu0 %v1591
    %1758 = vmatprep.subr.bf16.mxu0 %v1599
    %1759 = vmatpush1.bf16.msra.mxu0 %v1598
    %1760 = vmatprep.subr.bf16.mxu0 %v1606
    %1761 = vmatpush1.bf16.msra.mxu0 %v1605
    %1762 = vmatprep.subr.bf16.mxu0 0
    %1763 = vmatpush1.bf16.msra.mxu0 0
    %1764 = vmatprep.subr.bf16.mxu0 0
    %1765 = vmatpush1.bf16.msra.mxu0 0
    %1766 = vmatprep.subr.bf16.mxu0 0
    %1767 = vmatpush1.bf16.msra.mxu0 0
    %1768 = vmatprep.subr.bf16.mxu0 0
    %1769 = vmatpush1.bf16.msra.mxu0 0
    %1770 = vmatprep.subr.bf16.mxu0 0
    %1771 = vmatpush1.bf16.msra.mxu0 0
    %1772 = vmatprep.subr.bf16.mxu0 0
    %1773 = vmatpush1.bf16.msra.mxu0 0
    %1774 = vmatprep.subr.bf16.mxu0 0
    %1775 = vmatpush1.bf16.msra.mxu0 0
    %1776 = vmatprep.subr.bf16.mxu0 0
    %1777 = vmatpush1.bf16.msra.mxu0 0
    %1778 = vmatprep.mubr.bf16.mxu0 0
    %1779 = vmatmul.mubr.bf16.gmra.mrb[0].mxu0 %v1274
    %v1780 = vpop.f32.mrb[0].mxu0
    %v1781 = vadd.f32 %v1360, %v1780
    %v1782 = vpop.f32.mrb[0].mxu0
    %v1783 = vadd.f32 %v1364, %v1782
    %v1784 = vpop.f32.mrb[0].mxu0
    %v1785 = vpop.f32.mrb[0].mxu0
    %1786 = vdwg.mxu0
    %1787 = vmatprep.subr.bf16.mxu0 0
    %1788 = vmatpush1.bf16.msra.mxu0 %v1558
    %1789 = vmatprep.subr.bf16.mxu0 0
    %1790 = vmatpush1.bf16.msra.mxu0 %v1565
    %1791 = vmatprep.subr.bf16.mxu0 0
    %1792 = vmatpush1.bf16.msra.mxu0 %v1572
    %1793 = vmatprep.subr.bf16.mxu0 0
    %1794 = vmatpush1.bf16.msra.mxu0 %v1579
    %1795 = vmatprep.subr.bf16.mxu0 0
    %1796 = vmatpush1.bf16.msra.mxu0 %v1586
    %1797 = vmatprep.subr.bf16.mxu0 0
    %1798 = vmatpush1.bf16.msra.mxu0 %v1593
    %1799 = vmatprep.subr.bf16.mxu0 0
    %1800 = vmatpush1.bf16.msra.mxu0 %v1600
    %1801 = vmatprep.subr.bf16.mxu0 0
    %1802 = vmatpush1.bf16.msra.mxu0 %v1607
    %1803 = vmatprep.subr.bf16.mxu0 0
    %1804 = vmatpush1.bf16.msra.mxu0 0
    %1805 = vmatprep.subr.bf16.mxu0 0
    %1806 = vmatpush1.bf16.msra.mxu0 0
    %1807 = vmatprep.subr.bf16.mxu0 0
    %1808 = vmatpush1.bf16.msra.mxu0 0
    %1809 = vmatprep.subr.bf16.mxu0 0
    %1810 = vmatpush1.bf16.msra.mxu0 0
    %1811 = vmatprep.subr.bf16.mxu0 0
    %1812 = vmatpush1.bf16.msra.mxu0 0
    %1813 = vmatprep.subr.bf16.mxu0 0
    %1814 = vmatpush1.bf16.msra.mxu0 0
    %1815 = vmatprep.subr.bf16.mxu0 0
    %1816 = vmatpush1.bf16.msra.mxu0 0
    %1817 = vmatprep.subr.bf16.mxu0 0
    %1818 = vmatpush1.bf16.msra.mxu0 0
    %1819 = vmatprep.mubr.bf16.mxu0 0
    %1820 = vmatmul.mubr.bf16.gmra.mrb[0].mxu0 %v1274
    %v1821 = vpop.f32.mrb[0].mxu0
    %v1822 = vadd.f32 %v1368, %v1821
    %v1823 = vpop.f32.mrb[0].mxu0
    %v1824 = vpop.f32.mrb[0].mxu0
    %v1825 = vpop.f32.mrb[0].mxu0
    %1826 = vdwg.mxu0
    %v1827 = vtanh.pop %v1699
    %v1828 = vtanh.pop %v1701
    %v1829 = vtanh.pop %v1740
    %v1830 = vtanh.pop %v1742
    %v1831 = vtanh.pop %v1781
    %v1832 = vtanh.pop %v1783
    %v1833 = vtanh.pop %v1822
    %1834 = vst [vmem:[#allocation26] sm:$0xff] %v1827
    %1835 = vst [vmem:[#allocation26 + $0x8] sm:$0xff] %v1828
    %1836 = vst [vmem:[#allocation26 + $0x10] sm:$0xff] %v1829
    %1837 = vst [vmem:[#allocation26 + $0x18] sm:$0xff] %v1830
    %1838 = vst [vmem:[#allocation26 + $0x20] sm:$0xff] %v1831
    %1839 = vst [vmem:[#allocation26 + $0x28] sm:$0xff] %v1832
    %1840 = vst.msk [vmem:[#allocation26 + $0x30] sm:$0xff] %vm646, %v1833
    // Predicated region
    $region114: #{autoencoder_forward.1} parent=1 // pred_check
      _
    $region115: #{autoencoder_forward.1} parent=1 // pred_check_branch
      %1842 = sbr.rel (0) target = $region117
    $region116: #{autoencoder_forward.1} parent=1 // pred_region
      %s1844 = ssub.s32 128, 128
      %1845 = vsyncadd [#allocation6], %s1844
      %s1847 = sshll.u32 [#allocation25], 4
      %s1848 = int_to_ptr.vmem [resolvable:$true] %s1847
      %1850 = dma.vmem_to_hbm [thread:$0]  %s1848, 128, %s15, [#allocation6]
    $region117: #{autoencoder_forward.1} parent=1 // pred_fallthru
      _
    // Predicated region
    $region118: #{autoencoder_forward.1} parent=1 // pred_check
      _
    $region119: #{autoencoder_forward.1} parent=1 // pred_check_branch
      %1852 = sbr.rel (0) target = $region121
    $region120: #{autoencoder_forward.1} parent=1 // pred_region
      %s1854 = ssub.s32 896, 896
      %1855 = vsyncadd [#allocation27], %s1854
      %s1857 = sshll.u32 [#allocation26], 4
      %s1858 = int_to_ptr.vmem [resolvable:$true] %s1857
      %1860 = dma.vmem_to_hbm [thread:$0]  %s1858, 896, %s16, [#allocation27]
    $region121: #{autoencoder_forward.1} parent=1 // pred_fallthru
      _
    // Predicated region
    $region122: #{autoencoder_forward.1} parent=1 // pred_check
      _
    $region123: #{autoencoder_forward.1} parent=1 // pred_check_branch
      %1862 = sbr.rel (0) target = $region125
    $region124: #{autoencoder_forward.1} parent=1 // pred_region
      %1863 = dma.done [#allocation6], 128
    $region125: #{autoencoder_forward.1} parent=1 // pred_fallthru
      _
    // Predicated region
    $region126: #{autoencoder_forward.1} parent=1 // pred_check
      _
    $region127: #{autoencoder_forward.1} parent=1 // pred_check_branch
      %1865 = sbr.rel (0) target = $region129
    $region128: #{autoencoder_forward.1} parent=1 // pred_region
      %1866 = dma.done [#allocation27], 896
    $region129: #{autoencoder_forward.1} parent=1 // pred_fallthru
      _
    %1867 = vsyncpa [#allocation5], 1
    %1868 = vsyncpa [#allocation8], 1
    %1869 = vsyncpa [#allocation11], 1
    %1870 = vsyncpa [#allocation14], 1
    %1871 = vsyncpa [#allocation17], 1
    %1872 = vsyncpa [#allocation20], 1
    %1873 = vsyncpa [#allocation23], 1
    %1874 = vsyncpa [#allocation6], 1
    %1875 = vsyncpa [#allocation27], 1

</llo_original>
